<compile_context>
chip_gen: v7x
topology: tpu7x:2x2x1
jax: 0.10.0
libtpu: 0.0.40
codegen_flags: <defaults>
</compile_context>

<pallas_src>
import jax
import jax.numpy as jnp
from jax.experimental import pallas as pl
from jax.experimental.pallas import tpu as pltpu

LANE = 128        # TPU lane width; every feature dim is padded to this
NUM_W = 6         # w1e, w2e, w_heads(mu|logvar fused), w1d, w2d, wout
NUM_B = 8         # 6 bias rows + 2 zero rows (sublane-align to 8)


def _round_up(n, m):
    return ((n + m - 1) // m) * m


def _lane_offsets(input_size, latent_size):
    """Lane offsets for the packed layout.

    mu (and eps) live at lanes [MU_OFF, MU_OFF+latent); logvar lives exactly
    64 lanes higher so a single direction-agnostic roll-by-64 realigns it.
    """
    mu_off = _round_up(input_size, 8)
    lv_off = mu_off + LANE // 2
    if mu_off + latent_size > LANE // 2:
        raise ValueError(
            "lane-packed layout requires round_up(input_size,8) + latent_size <= 64 "
            f"(got input_size={input_size}, latent_size={latent_size})")
    return mu_off, lv_off


def _num_tensorcores():
    """2 on dual-TensorCore chips (v7x), 1 otherwise. Heuristic only affects tiling."""
    try:
        kind = jax.devices()[0].device_kind.lower()
    except Exception:
        return 1
    return 2 if "7" in kind else 1


# -----------------------------------------------------------------------------
# Kernel: full VAE forward for one batch tile.
#   in_ref  : (TB, 128)   x at lanes [0,input), eps at lanes [MU_OFF,..), 0 elsewhere
#   w_ref   : (6, 128, 128) packed weights (zero outside the real sub-blocks)
#   b_ref   : (8, 128)      packed biases  (zero padded)
#   out_ref : (TB, 128)   lane-packed [x_hat | mu@MU_OFF | logvar@MU_OFF+64]
# -----------------------------------------------------------------------------
def vae_kernel(in_ref, w_ref, b_ref, out_ref):
    b_all = b_ref[...].astype(jnp.float32)        # (8, 128)
    wdt = w_ref.dtype                             # bf16 by default (f32 optional)

    def dense(h, idx):
        # lane-dense (TB,128) @ (128,128) MXU matmul, f32 accumulation
        y = jnp.dot(h.astype(wdt), w_ref[idx], preferred_element_type=jnp.float32)
        return y + b_all[idx:idx + 1, :]

    # ---- encoder: Linear -> ReLU -> Linear -> ReLU --------------------------
    # eps lanes of the input slab hit all-zero rows of the padded encoder
    # weight, so the hidden activations are exact.
    h = jnp.maximum(dense(in_ref[...], 0), 0.0)
    h = jnp.maximum(dense(h, 1), 0.0)

    # ---- fused latent heads: one matmul yields mu at lanes [MU_OFF,..) and --
    # ---- logvar at lanes [MU_OFF+64,..) (wmu/wlv packed into one weight). ---
    lat = dense(h, 2)

    # Store the mu/logvar half of the lane-packed output early: frees vregs and
    # lets the output DMA overlap the decoder matmuls.
    out_ref[...] = lat.astype(out_ref.dtype)

    # ---- reparametrize: z = mu + exp(0.5*logvar) * eps ----------------------
    # Roll by 64 lanes aligns logvar with mu/eps (64 == -64 mod 128 -> the
    # rotation direction does not matter); runs on the idle XLU slot.
    lv_aligned = pltpu.roll(lat, shift=LANE // 2, axis=1)
    z = lat + jnp.exp(0.5 * lv_aligned) * in_ref[...]
    # Lanes outside [MU_OFF, MU_OFF+latent) carry junk (a copy of x / logvar),
    # but they multiply all-zero rows of the packed decoder weight -> exact.

    # ---- decoder: Linear -> ReLU -> Linear -> ReLU -> Linear (no sigmoid,
    # matching use_sigmoid=False; enabling it would need a lane mask before the
    # final add) ---------------------------------------------------------------
    d = jnp.maximum(dense(z, 3), 0.0)
    d = jnp.maximum(dense(d, 4), 0.0)
    x_hat = dense(d, 5)                           # nonzero only at lanes [0, input)

    # x_hat lanes and the mu/logvar lanes are disjoint -> a plain add completes
    # the single lane-packed (TB,128) output with one unmasked store stream.
    out_ref[...] = out_ref[...] + x_hat.astype(out_ref.dtype)


# -----------------------------------------------------------------------------
# Host-side packing of nn.Linear parameters into two slabs.
# Weights are stored (in_features, out_features) so the kernel does x @ W + b.
# param_dtype defaults to bf16 (halves the weight DMA); biases stay f32 (4 KB).
# -----------------------------------------------------------------------------
def pack_params(params, param_dtype=jnp.bfloat16):
    input_size, hidden_dim = params["w1e"].shape
    latent_size = params["wmu"].shape[1]
    mu_off, lv_off = _lane_offsets(input_size, latent_size)

    def pad_w(w, row_off=0, col_off=0, base=None):
        base = jnp.zeros((LANE, LANE), jnp.float32) if base is None else base
        return base.at[row_off:row_off + w.shape[0],
                       col_off:col_off + w.shape[1]].set(w.astype(jnp.float32))

    def pad_b(b, col_off=0, base=None):
        base = jnp.zeros((LANE,), jnp.float32) if base is None else base
        b = b.reshape(-1)
        return base.at[col_off:col_off + b.shape[0]].set(b.astype(jnp.float32))

    # fused mu|logvar head: wmu cols at [mu_off,..), wlv cols at [lv_off,..)
    w_heads = pad_w(params["wlv"], 0, lv_off, pad_w(params["wmu"], 0, mu_off))
    b_heads = pad_b(params["blv"], lv_off, pad_b(params["bmu"], mu_off))

    ws = [
        pad_w(params["w1e"]),                   # 0: encoder L1   (rows [0,input))
        pad_w(params["w2e"]),                   # 1: encoder L2
        w_heads,                                # 2: fused latent heads
        pad_w(params["w1d"], row_off=mu_off),   # 3: decoder L1   (rows at latent lanes)
        pad_w(params["w2d"]),                   # 4: decoder L2
        pad_w(params["wout"]),                  # 5: decoder out  (cols [0,input))
    ]
    bs = [pad_b(params["b1e"]), pad_b(params["b2e"]), b_heads,
          pad_b(params["b1d"]), pad_b(params["b2d"]), pad_b(params["bout"]),
          jnp.zeros((LANE,), jnp.float32), jnp.zeros((LANE,), jnp.float32)]

    w_slab = jnp.stack(ws).astype(param_dtype)   # (6, 128, 128)
    b_slab = jnp.stack(bs)                       # (8, 128) f32
    return w_slab, b_slab, (mu_off, lv_off)


# -----------------------------------------------------------------------------
# Wrapper: packs inputs into one lane-dense slab, tiles the batch axis, calls
# the kernel, and slices the packed output back into (x_hat, mu, logvar).
# -----------------------------------------------------------------------------
def vae_forward(x, params, eps, *, batch_tile=None, param_dtype=jnp.bfloat16):
    B, input_size = x.shape
    hidden_dim = params["w1e"].shape[1]
    latent_size = params["wmu"].shape[1]
    assert max(input_size, hidden_dim, latent_size) <= LANE

    w_slab, b_slab, (mu_off, lv_off) = pack_params(params, param_dtype)

    # Batch tiling: one fat tile per TensorCore (single tile on v5e/v6e, two on
    # v7x), capped so the per-step working set stays small for huge batches.
    if batch_tile is None:
        tb = min(_round_up(pl.cdiv(B, _num_tensorcores()), 8), 1024)
    else:
        tb = min(batch_tile, _round_up(B, 8))
    tb = max(tb, 8)
    Bp = _round_up(B, tb)
    grid = (Bp // tb,)

    # single lane-dense input slab: x at lanes [0,input), eps at [mu_off,..)
    xin = jnp.zeros((Bp, LANE), jnp.float32)
    xin = xin.at[:B, :input_size].set(x.astype(jnp.float32))
    xin = xin.at[:B, mu_off:mu_off + latent_size].set(eps.astype(jnp.float32))

    itemsize = jnp.dtype(param_dtype).itemsize
    flops = 2 * Bp * LANE * LANE * NUM_W          # padded dims; advisory only
    transcendentals = Bp * LANE                   # exp in reparametrize
    bytes_accessed = (xin.size * 4 + w_slab.size * itemsize
                      + b_slab.size * 4 + Bp * LANE * 4)

    grid_spec = pltpu.PrefetchScalarGridSpec(
        num_scalar_prefetch=0,
        grid=grid,
        in_specs=[
            pl.BlockSpec((tb, LANE), lambda i: (i, 0)),              # packed x|eps tile
            pl.BlockSpec((NUM_W, LANE, LANE), lambda i: (0, 0, 0)),  # weights (resident)
            pl.BlockSpec((NUM_B, LANE), lambda i: (0, 0)),           # biases  (resident)
        ],
        out_specs=pl.BlockSpec((tb, LANE), lambda i: (i, 0)),        # lane-packed output
    )

    out = pl.pallas_call(
        vae_kernel,
        out_shape=jax.ShapeDtypeStruct((Bp, LANE), jnp.float32),
        grid_spec=grid_spec,
        compiler_params=pltpu.CompilerParams(
            # "parallel" batch axis; if profiling on v7x shows a single core
            # doing all steps, switch to pltpu.CORE_PARALLEL here.
            dimension_semantics=("parallel",),
        ),
        cost_estimate=pl.CostEstimate(
            flops=flops,
            transcendentals=transcendentals,
            bytes_accessed=bytes_accessed,
        ),
    )(xin, w_slab, b_slab)

    x_hat = out[:B, :input_size]
    mu = out[:B, mu_off:mu_off + latent_size]
    logvar = out[:B, lv_off:lv_off + latent_size]
    return x_hat, mu, logvar


# -----------------------------------------------------------------------------
# Deterministic parameter construction (mirrors nn.Linear shapes/init)
# -----------------------------------------------------------------------------
def init_params(key, input_size, hidden_dim, latent_size):
    def linear(k, fan_in, fan_out):
        kw, kb = jax.random.split(k)
        bound = 1.0 / jnp.sqrt(fan_in)
        w = jax.random.uniform(kw, (fan_in, fan_out), jnp.float32, -bound, bound)
        b = jax.random.uniform(kb, (1, fan_out), jnp.float32, -bound, bound)
        return w, b

    keys = jax.random.split(key, 7)
    p = {}
    p["w1e"], p["b1e"] = linear(keys[0], input_size, hidden_dim)
    p["w2e"], p["b2e"] = linear(keys[1], hidden_dim, hidden_dim)
    p["wmu"], p["bmu"] = linear(keys[2], hidden_dim, latent_size)
    p["wlv"], p["blv"] = linear(keys[3], hidden_dim, latent_size)
    p["w1d"], p["b1d"] = linear(keys[4], latent_size, hidden_dim)
    p["w2d"], p["b2d"] = linear(keys[5], hidden_dim, hidden_dim)
    p["wout"], p["bout"] = linear(keys[6], hidden_dim, input_size)
    return p


# -----------------------------------------------------------------------------
# Pure-JAX reference (same math, same eps)
# -----------------------------------------------------------------------------
def vae_ref(x, p, eps):
    h = jnp.maximum(x @ p["w1e"] + p["b1e"], 0.0)
    h = jnp.maximum(h @ p["w2e"] + p["b2e"], 0.0)
    mu = h @ p["wmu"] + p["bmu"]
    logvar = h @ p["wlv"] + p["blv"]
    z = mu + jnp.exp(0.5 * logvar) * eps
    d = jnp.maximum(z @ p["w1d"] + p["b1d"], 0.0)
    d = jnp.maximum(d @ p["w2d"] + p["b2d"], 0.0)
    x_hat = d @ p["wout"] + p["bout"]
    return x_hat, mu, logvar


if __name__ == "__main__":
    # VAE(input_size=16, hidden_dim=32, latent_size=15), batch 256.
    batch, input_size, hidden_dim, latent_size = 256, 16, 32, 15

    key = jax.random.PRNGKey(0)
    k_params, k_x, k_eps = jax.random.split(key, 3)

    params = init_params(k_params, input_size, hidden_dim, latent_size)
    x = jax.random.normal(k_x, (batch, input_size), jnp.float32)
    eps = jax.random.normal(k_eps, (batch, latent_size), jnp.float32)

    # Fast default path: bf16 weight slab. Compare against a reference using
    # bf16-rounded weights so only the (small) in-kernel activation casts differ.
    x_hat, mu, logvar = vae_forward(x, params, eps)
    jax.block_until_ready((x_hat, mu, logvar))
    p_bf16 = {k: v.astype(jnp.bfloat16).astype(jnp.float32) for k, v in params.items()}
    rx, rmu, rlv = vae_ref(x, p_bf16, eps)
    assert jnp.allclose(x_hat, rx, atol=5e-2, rtol=5e-2), float(jnp.max(jnp.abs(x_hat - rx)))
    assert jnp.allclose(mu, rmu, atol=5e-2, rtol=5e-2)
    assert jnp.allclose(logvar, rlv, atol=5e-2, rtol=5e-2)

    # Exactness check of the packed/fused layout with f32 weights.
    x32, m32, l32 = vae_forward(x, params, eps, param_dtype=jnp.float32)
    jax.block_until_ready((x32, m32, l32))
    rx32, rmu32, rlv32 = vae_ref(x, params, eps)
    assert jnp.allclose(x32, rx32, atol=2e-4, rtol=2e-4), float(jnp.max(jnp.abs(x32 - rx32)))
    assert jnp.allclose(m32, rmu32, atol=2e-4, rtol=2e-4)
    assert jnp.allclose(l32, rlv32, atol=2e-4, rtol=2e-4)

    print("KERNEL_OK")
</pallas_src>

<mosaic_0001>
module attributes {stable_mosaic.version = 11 : i64} {
  func.func @vae_kernel(%arg0: i32, %arg1: memref<256x128xf32, #tpu.memory_space<vmem>>, %arg2: memref<6x128x128xbf16, #tpu.memory_space<vmem>>, %arg3: memref<8x128xf32, #tpu.memory_space<vmem>>, %arg4: memref<256x128xf32, #tpu.memory_space<vmem>>) attributes {dimension_semantics = [#tpu.dimension_semantics<parallel>], iteration_bounds = array<i64: 1>, scalar_prefetch = 0 : i64, scratch_operands = 0 : i64, tpu.core_type = #tpu.core_type<tc>, window_params = [{transform_indices = @transform_0, window_bounds = array<i64: 256, 128>}, {pipeline_mode = #tpu.pipeline_mode<synchronous>, transform_indices = @transform_1, window_bounds = array<i64: 6, 128, 128>}, {pipeline_mode = #tpu.pipeline_mode<synchronous>, transform_indices = @transform_2, window_bounds = array<i64: 8, 128>}, {transform_indices = @transform_3, window_bounds = array<i64: 256, 128>}]} {
    %c0 = arith.constant 0 : index
    %c0_0 = arith.constant 0 : index
    %0 = vector.load %arg3[%c0, %c0_0] : memref<8x128xf32, #tpu.memory_space<vmem>>, vector<8x128xf32>
    %c0_1 = arith.constant 0 : index
    %c0_2 = arith.constant 0 : index
    %1 = vector.load %arg1[%c0_1, %c0_2] : memref<256x128xf32, #tpu.memory_space<vmem>>, vector<256x128xf32>
    %2 = arith.truncf %1 : vector<256x128xf32> to vector<256x128xbf16>
    %c0_3 = arith.constant 0 : index
    %c0_4 = arith.constant 0 : index
    %c0_5 = arith.constant 0 : index
    %3 = vector.load %arg2[%c0_3, %c0_4, %c0_5] : memref<6x128x128xbf16, #tpu.memory_space<vmem>>, vector<1x128x128xbf16>
    %4 = vector.shape_cast %3 : vector<1x128x128xbf16> to vector<128x128xbf16>
    %cst = arith.constant dense<0.000000e+00> : vector<256x128xf32>
    %5 = tpu.matmul %2, %4, %cst {dimension_numbers = #tpu.dot_dimension_numbers<[1], [0], [0], [1], [0, 0, 1, 1], [], []>} : vector<256x128xbf16>, vector<128x128xbf16>, vector<256x128xf32> -> vector<256x128xf32>
    %6 = vector.extract_strided_slice %0 {offsets = [0, 0], sizes = [1, 128], strides = [1, 1]} : vector<8x128xf32> to vector<1x128xf32>
    %7 = vector.broadcast %6 : vector<1x128xf32> to vector<256x128xf32>
    %8 = arith.addf %5, %7 : vector<256x128xf32>
    %cst_6 = arith.constant 0.000000e+00 : f32
    %9 = vector.broadcast %cst_6 : f32 to vector<256x128xf32>
    %10 = arith.maximumf %8, %9 : vector<256x128xf32>
    %11 = arith.truncf %10 : vector<256x128xf32> to vector<256x128xbf16>
    %c1 = arith.constant 1 : index
    %c0_7 = arith.constant 0 : index
    %c0_8 = arith.constant 0 : index
    %12 = vector.load %arg2[%c1, %c0_7, %c0_8] : memref<6x128x128xbf16, #tpu.memory_space<vmem>>, vector<1x128x128xbf16>
    %13 = vector.shape_cast %12 : vector<1x128x128xbf16> to vector<128x128xbf16>
    %cst_9 = arith.constant dense<0.000000e+00> : vector<256x128xf32>
    %14 = tpu.matmul %11, %13, %cst_9 {dimension_numbers = #tpu.dot_dimension_numbers<[1], [0], [0], [1], [0, 0, 1, 1], [], []>} : vector<256x128xbf16>, vector<128x128xbf16>, vector<256x128xf32> -> vector<256x128xf32>
    %15 = vector.extract_strided_slice %0 {offsets = [1, 0], sizes = [1, 128], strides = [1, 1]} : vector<8x128xf32> to vector<1x128xf32>
    %16 = vector.broadcast %15 : vector<1x128xf32> to vector<256x128xf32>
    %17 = arith.addf %14, %16 : vector<256x128xf32>
    %cst_10 = arith.constant 0.000000e+00 : f32
    %18 = vector.broadcast %cst_10 : f32 to vector<256x128xf32>
    %19 = arith.maximumf %17, %18 : vector<256x128xf32>
    %20 = arith.truncf %19 : vector<256x128xf32> to vector<256x128xbf16>
    %c2 = arith.constant 2 : index
    %c0_11 = arith.constant 0 : index
    %c0_12 = arith.constant 0 : index
    %21 = vector.load %arg2[%c2, %c0_11, %c0_12] : memref<6x128x128xbf16, #tpu.memory_space<vmem>>, vector<1x128x128xbf16>
    %22 = vector.shape_cast %21 : vector<1x128x128xbf16> to vector<128x128xbf16>
    %cst_13 = arith.constant dense<0.000000e+00> : vector<256x128xf32>
    %23 = tpu.matmul %20, %22, %cst_13 {dimension_numbers = #tpu.dot_dimension_numbers<[1], [0], [0], [1], [0, 0, 1, 1], [], []>} : vector<256x128xbf16>, vector<128x128xbf16>, vector<256x128xf32> -> vector<256x128xf32>
    %24 = vector.extract_strided_slice %0 {offsets = [2, 0], sizes = [1, 128], strides = [1, 1]} : vector<8x128xf32> to vector<1x128xf32>
    %25 = vector.broadcast %24 : vector<1x128xf32> to vector<256x128xf32>
    %26 = arith.addf %23, %25 : vector<256x128xf32>
    %c0_14 = arith.constant 0 : index
    %c0_15 = arith.constant 0 : index
    %27 = vector.load %arg4[%c0_14, %c0_15] : memref<256x128xf32, #tpu.memory_space<vmem>>, vector<256x128xf32>
    tpu.vector_store %arg4[%c0_14, %c0_15], %26 {strides = array<i32>} : memref<256x128xf32, #tpu.memory_space<vmem>>, vector<256x128xf32>,
    %c64_i32 = arith.constant 64 : i32
    %28 = tpu.dynamic_rotate %26 by %c64_i32 dim 1 : vector<256x128xf32>, i32 -> vector<256x128xf32>
    %cst_16 = arith.constant 5.000000e-01 : f32
    %29 = vector.broadcast %cst_16 : f32 to vector<256x128xf32>
    %30 = arith.mulf %29, %28 : vector<256x128xf32>
    %31 = math.exp %30 : vector<256x128xf32>
    %c0_17 = arith.constant 0 : index
    %c0_18 = arith.constant 0 : index
    %32 = vector.load %arg1[%c0_17, %c0_18] : memref<256x128xf32, #tpu.memory_space<vmem>>, vector<256x128xf32>
    %33 = arith.mulf %31, %32 : vector<256x128xf32>
    %34 = arith.addf %26, %33 : vector<256x128xf32>
    %35 = arith.truncf %34 : vector<256x128xf32> to vector<256x128xbf16>
    %c3 = arith.constant 3 : index
    %c0_19 = arith.constant 0 : index
    %c0_20 = arith.constant 0 : index
    %36 = vector.load %arg2[%c3, %c0_19, %c0_20] : memref<6x128x128xbf16, #tpu.memory_space<vmem>>, vector<1x128x128xbf16>
    %37 = vector.shape_cast %36 : vector<1x128x128xbf16> to vector<128x128xbf16>
    %cst_21 = arith.constant dense<0.000000e+00> : vector<256x128xf32>
    %38 = tpu.matmul %35, %37, %cst_21 {dimension_numbers = #tpu.dot_dimension_numbers<[1], [0], [0], [1], [0, 0, 1, 1], [], []>} : vector<256x128xbf16>, vector<128x128xbf16>, vector<256x128xf32> -> vector<256x128xf32>
    %39 = vector.extract_strided_slice %0 {offsets = [3, 0], sizes = [1, 128], strides = [1, 1]} : vector<8x128xf32> to vector<1x128xf32>
    %40 = vector.broadcast %39 : vector<1x128xf32> to vector<256x128xf32>
    %41 = arith.addf %38, %40 : vector<256x128xf32>
    %cst_22 = arith.constant 0.000000e+00 : f32
    %42 = vector.broadcast %cst_22 : f32 to vector<256x128xf32>
    %43 = arith.maximumf %41, %42 : vector<256x128xf32>
    %44 = arith.truncf %43 : vector<256x128xf32> to vector<256x128xbf16>
    %c4 = arith.constant 4 : index
    %c0_23 = arith.constant 0 : index
    %c0_24 = arith.constant 0 : index
    %45 = vector.load %arg2[%c4, %c0_23, %c0_24] : memref<6x128x128xbf16, #tpu.memory_space<vmem>>, vector<1x128x128xbf16>
    %46 = vector.shape_cast %45 : vector<1x128x128xbf16> to vector<128x128xbf16>
    %cst_25 = arith.constant dense<0.000000e+00> : vector<256x128xf32>
    %47 = tpu.matmul %44, %46, %cst_25 {dimension_numbers = #tpu.dot_dimension_numbers<[1], [0], [0], [1], [0, 0, 1, 1], [], []>} : vector<256x128xbf16>, vector<128x128xbf16>, vector<256x128xf32> -> vector<256x128xf32>
    %48 = vector.extract_strided_slice %0 {offsets = [4, 0], sizes = [1, 128], strides = [1, 1]} : vector<8x128xf32> to vector<1x128xf32>
    %49 = vector.broadcast %48 : vector<1x128xf32> to vector<256x128xf32>
    %50 = arith.addf %47, %49 : vector<256x128xf32>
    %cst_26 = arith.constant 0.000000e+00 : f32
    %51 = vector.broadcast %cst_26 : f32 to vector<256x128xf32>
    %52 = arith.maximumf %50, %51 : vector<256x128xf32>
    %53 = arith.truncf %52 : vector<256x128xf32> to vector<256x128xbf16>
    %c5 = arith.constant 5 : index
    %c0_27 = arith.constant 0 : index
    %c0_28 = arith.constant 0 : index
    %54 = vector.load %arg2[%c5, %c0_27, %c0_28] : memref<6x128x128xbf16, #tpu.memory_space<vmem>>, vector<1x128x128xbf16>
    %55 = vector.shape_cast %54 : vector<1x128x128xbf16> to vector<128x128xbf16>
    %cst_29 = arith.constant dense<0.000000e+00> : vector<256x128xf32>
    %56 = tpu.matmul %53, %55, %cst_29 {dimension_numbers = #tpu.dot_dimension_numbers<[1], [0], [0], [1], [0, 0, 1, 1], [], []>} : vector<256x128xbf16>, vector<128x128xbf16>, vector<256x128xf32> -> vector<256x128xf32>
    %57 = vector.extract_strided_slice %0 {offsets = [5, 0], sizes = [1, 128], strides = [1, 1]} : vector<8x128xf32> to vector<1x128xf32>
    %58 = vector.broadcast %57 : vector<1x128xf32> to vector<256x128xf32>
    %59 = arith.addf %56, %58 : vector<256x128xf32>
    %c0_30 = arith.constant 0 : index
    %c0_31 = arith.constant 0 : index
    %60 = vector.load %arg4[%c0_30, %c0_31] : memref<256x128xf32, #tpu.memory_space<vmem>>, vector<256x128xf32>
    %61 = arith.addf %60, %59 : vector<256x128xf32>
    %c0_32 = arith.constant 0 : index
    %c0_33 = arith.constant 0 : index
    %62 = vector.load %arg4[%c0_32, %c0_33] : memref<256x128xf32, #tpu.memory_space<vmem>>, vector<256x128xf32>
    tpu.vector_store %arg4[%c0_32, %c0_33], %61 {strides = array<i32>} : memref<256x128xf32, #tpu.memory_space<vmem>>, vector<256x128xf32>,
    return
  }
  func.func @transform_0(%arg0: i32) -> (i32, i32) {
    %c0_i32 = arith.constant 0 : i32
    %c0_i32_0 = arith.constant 0 : i32
    return %arg0, %c0_i32 : i32, i32
  }
  func.func @transform_1(%arg0: i32) -> (i32, i32, i32) {
    %c0_i32 = arith.constant 0 : i32
    %c0_i32_0 = arith.constant 0 : i32
    %c0_i32_1 = arith.constant 0 : i32
    %c0_i32_2 = arith.constant 0 : i32
    return %c0_i32, %c0_i32_0, %c0_i32_1 : i32, i32, i32
  }
  func.func @transform_2(%arg0: i32) -> (i32, i32) {
    %c0_i32 = arith.constant 0 : i32
    %c0_i32_0 = arith.constant 0 : i32
    %c0_i32_1 = arith.constant 0 : i32
    return %c0_i32, %c0_i32_0 : i32, i32
  }
  func.func @transform_3(%arg0: i32) -> (i32, i32) {
    %c0_i32 = arith.constant 0 : i32
    %c0_i32_0 = arith.constant 0 : i32
    return %arg0, %c0_i32 : i32, i32
  }
}

</mosaic_0001>

<llo_original>
// kernel: tpu_custom_call.1
$region0: #{tpu_custom_call.1}
  #allocation0 [shape = 'u32[]', space=smem, size = 0x4, offset = 0x4, fixed_abs, tag = 'smem constant byte address 0x4 - core index']
  #allocation1 [shape = 'u32[144,128]{1,0:T(1,128)}', space=vmem, size = 0x12000, scoped, tag = 'internal scratch']
  %s0 = inlined_call_operand.hbm [shape: f32[256,128], index: 0, kind: input, shape index: {}]
  %s1 = inlined_call_operand.hbm [shape: bf16[6,128,128], index: 1, kind: input, shape index: {}]
  %s2 = inlined_call_operand.hbm [shape: f32[8,128], index: 2, kind: input, shape index: {}]
  %s3 = inlined_call_operand.hbm [shape: f32[256,128], index: 3, kind: output, shape index: {}]
  %s4 = sld [smem:[#allocation0]]
  $region34: #{tpu_custom_call.1} parent=0
    _
  %s6 = ssub.s32 1, %s4
  %s7 = scalar_select 0, %s6, %s4
  $region1: #{tpu_custom_call.1} parent=0
    #allocation2 [shape = 'u8[131072]{0}', space=vmem, size = 0x20000, scoped, tag = 'input window, operand 0, single buffered']
    #allocation3 [shape = 's32[1]{0}', space=sflag, size = 0x4, scoped, tag = 'scoped memory for tpu_custom_call.1']
    #allocation4 [shape = 's32[1]{0}', space=sflag, size = 0x4, scoped, tag = 'scoped memory for tpu_custom_call.1']
    #allocation5 [shape = 'u8[196608]{0}', space=vmem, size = 0x30000, scoped, tag = 'input window, operand 1, single buffered']
    #allocation6 [shape = 's32[1]{0}', space=sflag, size = 0x4, scoped, tag = 'scoped memory for tpu_custom_call.1']
    #allocation7 [shape = 'u8[4096]{0}', space=vmem, size = 0x1000, scoped, tag = 'input window, operand 2, single buffered']
    #allocation8 [shape = 'u8[131072]{0}', space=vmem, size = 0x20000, scoped, tag = 'output window, operand 0, single buffered']
    %8 = vsyncpa [#allocation3], 0
    %9 = vsyncpa [#allocation6], 0
    %10 = vsyncpa [#allocation4], 0
    // Predicated region
    $region2: #{tpu_custom_call.1} parent=1 // pred_check
      _
    $region3: #{tpu_custom_call.1} parent=1 // pred_check_branch
      %12 = sbr.rel (0) target = $region5
    $region4: #{tpu_custom_call.1} parent=1 // pred_region
      %s14 = ssub.s32 4096, 4096
      %15 = vsyncadd [#allocation3], %s14
      %s16 = sshll.u32 [#allocation2], 4
      %s17 = int_to_ptr.vmem [resolvable:$true] %s16
      %22 = dma.hbm_to_vmem [thread:$0]  %s0, 4096, %s17, [#allocation3], 128, 128, 8
    $region5: #{tpu_custom_call.1} parent=1 // pred_fallthru
      _
    // Predicated region
    $region6: #{tpu_custom_call.1} parent=1 // pred_check
      _
    $region7: #{tpu_custom_call.1} parent=1 // pred_check_branch
      %24 = sbr.rel (0) target = $region9
    $region8: #{tpu_custom_call.1} parent=1 // pred_region
      %s26 = ssub.s32 6144, 6144
      %27 = vsyncadd [#allocation6], %s26
      %s28 = sshll.u32 [#allocation5], 4
      %s29 = int_to_ptr.vmem [resolvable:$true] %s28
      %34 = dma.hbm_to_vmem [thread:$0]  %s1, 6144, %s29, [#allocation6], 64, 64, 4
    $region9: #{tpu_custom_call.1} parent=1 // pred_fallthru
      _
    // Predicated region
    $region10: #{tpu_custom_call.1} parent=1 // pred_check
      _
    $region11: #{tpu_custom_call.1} parent=1 // pred_check_branch
      %36 = sbr.rel (0) target = $region13
    $region12: #{tpu_custom_call.1} parent=1 // pred_region
      %s38 = ssub.s32 128, 128
      %39 = vsyncadd [#allocation6], %s38
      %s41 = sshll.u32 [#allocation7], 4
      %s42 = int_to_ptr.vmem [resolvable:$true] %s41
      %44 = dma.hbm_to_vmem [thread:$0]  %s2, 128, %s42, [#allocation6]
    $region13: #{tpu_custom_call.1} parent=1 // pred_fallthru
      _
    // Predicated region
    $region14: #{tpu_custom_call.1} parent=1 // pred_check
      _
    $region15: #{tpu_custom_call.1} parent=1 // pred_check_branch
      %46 = sbr.rel (0) target = $region17
    $region16: #{tpu_custom_call.1} parent=1 // pred_region
      %47 = dma.done [#allocation3], 4096
    $region17: #{tpu_custom_call.1} parent=1 // pred_fallthru
      _
    // Predicated region
    $region18: #{tpu_custom_call.1} parent=1 // pred_check
      _
    $region19: #{tpu_custom_call.1} parent=1 // pred_check_branch
      %49 = sbr.rel (0) target = $region21
    $region20: #{tpu_custom_call.1} parent=1 // pred_region
      %50 = dma.done [#allocation6], 6144
    $region21: #{tpu_custom_call.1} parent=1 // pred_fallthru
      _
    // Predicated region
    $region22: #{tpu_custom_call.1} parent=1 // pred_check
      _
    $region23: #{tpu_custom_call.1} parent=1 // pred_check_branch
      %52 = sbr.rel (0) target = $region25
    $region24: #{tpu_custom_call.1} parent=1 // pred_region
      %53 = dma.done [#allocation6], 128
    $region25: #{tpu_custom_call.1} parent=1 // pred_fallthru
      _
    %v55 = vld [vmem:[#allocation7] sm:$0xff]
    %v56 = vld [vmem:[#allocation2] sm:$0xff]
    %v57 = vld [vmem:[#allocation2 + $0x8] sm:$0xff]
    %v58 = vld [vmem:[#allocation2 + $0x10] sm:$0xff]
    %v59 = vld [vmem:[#allocation2 + $0x18] sm:$0xff]
    %v60 = vld [vmem:[#allocation2 + $0x20] sm:$0xff]
    %v61 = vld [vmem:[#allocation2 + $0x28] sm:$0xff]
    %v62 = vld [vmem:[#allocation2 + $0x30] sm:$0xff]
    %v63 = vld [vmem:[#allocation2 + $0x38] sm:$0xff]
    %v64 = vld [vmem:[#allocation2 + $0x40] sm:$0xff]
    %v65 = vld [vmem:[#allocation2 + $0x48] sm:$0xff]
    %v66 = vld [vmem:[#allocation2 + $0x50] sm:$0xff]
    %v67 = vld [vmem:[#allocation2 + $0x58] sm:$0xff]
    %v68 = vld [vmem:[#allocation2 + $0x60] sm:$0xff]
    %v69 = vld [vmem:[#allocation2 + $0x68] sm:$0xff]
    %v70 = vld [vmem:[#allocation2 + $0x70] sm:$0xff]
    %v71 = vld [vmem:[#allocation2 + $0x78] sm:$0xff]
    %v72 = vld [vmem:[#allocation2 + $0x80] sm:$0xff]
    %v73 = vld [vmem:[#allocation2 + $0x88] sm:$0xff]
    %v74 = vld [vmem:[#allocation2 + $0x90] sm:$0xff]
    %v75 = vld [vmem:[#allocation2 + $0x98] sm:$0xff]
    %v76 = vld [vmem:[#allocation2 + $0xa0] sm:$0xff]
    %v77 = vld [vmem:[#allocation2 + $0xa8] sm:$0xff]
    %v78 = vld [vmem:[#allocation2 + $0xb0] sm:$0xff]
    %v79 = vld [vmem:[#allocation2 + $0xb8] sm:$0xff]
    %v80 = vld [vmem:[#allocation2 + $0xc0] sm:$0xff]
    %v81 = vld [vmem:[#allocation2 + $0xc8] sm:$0xff]
    %v82 = vld [vmem:[#allocation2 + $0xd0] sm:$0xff]
    %v83 = vld [vmem:[#allocation2 + $0xd8] sm:$0xff]
    %v84 = vld [vmem:[#allocation2 + $0xe0] sm:$0xff]
    %v85 = vld [vmem:[#allocation2 + $0xe8] sm:$0xff]
    %v86 = vld [vmem:[#allocation2 + $0xf0] sm:$0xff]
    %v87 = vld [vmem:[#allocation2 + $0xf8] sm:$0xff]
    %v88 = vpack.c.bf16 %v57, %v56
    %v89 = vpack.c.bf16 %v59, %v58
    %v90 = vpack.c.bf16 %v61, %v60
    %v91 = vpack.c.bf16 %v63, %v62
    %v92 = vpack.c.bf16 %v65, %v64
    %v93 = vpack.c.bf16 %v67, %v66
    %v94 = vpack.c.bf16 %v69, %v68
    %v95 = vpack.c.bf16 %v71, %v70
    %v96 = vpack.c.bf16 %v73, %v72
    %v97 = vpack.c.bf16 %v75, %v74
    %v98 = vpack.c.bf16 %v77, %v76
    %v99 = vpack.c.bf16 %v79, %v78
    %v100 = vpack.c.bf16 %v81, %v80
    %v101 = vpack.c.bf16 %v83, %v82
    %v102 = vpack.c.bf16 %v85, %v84
    %v103 = vpack.c.bf16 %v87, %v86
    %v104 = vld [vmem:[#allocation5] sm:$0xf]
    %v105 = vld [vmem:[#allocation5 + $0x4] sm:$0xf]
    %v106 = vld [vmem:[#allocation5 + $0x8] sm:$0xf]
    %v107 = vld [vmem:[#allocation5 + $0xc] sm:$0xf]
    %v108 = vld [vmem:[#allocation5 + $0x10] sm:$0xf]
    %v109 = vld [vmem:[#allocation5 + $0x14] sm:$0xf]
    %v110 = vld [vmem:[#allocation5 + $0x18] sm:$0xf]
    %v111 = vld [vmem:[#allocation5 + $0x1c] sm:$0xf]
    %v112 = vld [vmem:[#allocation5 + $0x20] sm:$0xf]
    %v113 = vld [vmem:[#allocation5 + $0x24] sm:$0xf]
    %v114 = vld [vmem:[#allocation5 + $0x28] sm:$0xf]
    %v115 = vld [vmem:[#allocation5 + $0x2c] sm:$0xf]
    %v116 = vld [vmem:[#allocation5 + $0x30] sm:$0xf]
    %v117 = vld [vmem:[#allocation5 + $0x34] sm:$0xf]
    %v118 = vld [vmem:[#allocation5 + $0x38] sm:$0xf]
    %v119 = vld [vmem:[#allocation5 + $0x3c] sm:$0xf]
    %v120 = vlaneseq
    %v121 = vshrl.u32 %v120, 7
    %v122 = vsub.s32 0, %v121
    %v123 = vrot.slane %v55, %v122
    %v140 = vunpack.c.l.b16 %v104
    %v141 = vunpack.c.l.b16 %v105
    %v142 = vunpack.c.l.b16 %v106
    %v143 = vunpack.c.l.b16 %v107
    %v144 = vunpack.c.l.b16 %v108
    %v145 = vunpack.c.l.b16 %v109
    %v146 = vunpack.c.l.b16 %v110
    %v147 = vunpack.c.l.b16 %v111
    %v148 = vunpack.c.l.b16 %v112
    %v149 = vunpack.c.l.b16 %v113
    %v150 = vunpack.c.l.b16 %v114
    %v151 = vunpack.c.l.b16 %v115
    %v152 = vunpack.c.l.b16 %v116
    %v153 = vunpack.c.l.b16 %v117
    %v154 = vunpack.c.l.b16 %v118
    %v155 = vunpack.c.l.b16 %v119
    %v156 = vpack.c.b16 %v141, %v140
    %v157 = vpack.c.b16 %v143, %v142
    %v158 = vpack.c.b16 %v145, %v144
    %v159 = vpack.c.b16 %v147, %v146
    %v160 = vpack.c.b16 %v149, %v148
    %v161 = vpack.c.b16 %v151, %v150
    %v162 = vpack.c.b16 %v153, %v152
    %v163 = vpack.c.b16 %v155, %v154
    %172 = vmatprep.subr.bf16.mxu0 0
    %173 = vmatpush1.bf16.msra.mxu0 %v156
    %174 = vmatprep.subr.bf16.mxu0 0
    %175 = vmatpush1.bf16.msra.mxu0 %v157
    %176 = vmatprep.subr.bf16.mxu0 0
    %177 = vmatpush1.bf16.msra.mxu0 %v158
    %178 = vmatprep.subr.bf16.mxu0 0
    %179 = vmatpush1.bf16.msra.mxu0 %v159
    %180 = vmatprep.subr.bf16.mxu0 0
    %181 = vmatpush1.bf16.msra.mxu0 %v160
    %182 = vmatprep.subr.bf16.mxu0 0
    %183 = vmatpush1.bf16.msra.mxu0 %v161
    %184 = vmatprep.subr.bf16.mxu0 0
    %185 = vmatpush1.bf16.msra.mxu0 %v162
    %186 = vmatprep.subr.bf16.mxu0 0
    %187 = vmatpush1.bf16.msra.mxu0 %v163
    %188 = vmatprep.subr.bf16.mxu0 0
    %189 = vmatpush1.bf16.msra.mxu0 0
    %190 = vmatprep.subr.bf16.mxu0 0
    %191 = vmatpush1.bf16.msra.mxu0 0
    %192 = vmatprep.subr.bf16.mxu0 0
    %193 = vmatpush1.bf16.msra.mxu0 0
    %194 = vmatprep.subr.bf16.mxu0 0
    %195 = vmatpush1.bf16.msra.mxu0 0
    %196 = vmatprep.subr.bf16.mxu0 0
    %197 = vmatpush1.bf16.msra.mxu0 0
    %198 = vmatprep.subr.bf16.mxu0 0
    %199 = vmatpush1.bf16.msra.mxu0 0
    %200 = vmatprep.subr.bf16.mxu0 0
    %201 = vmatpush1.bf16.msra.mxu0 0
    %202 = vmatprep.subr.bf16.mxu0 0
    %203 = vmatpush1.bf16.msra.mxu0 0
    %204 = vmatprep.mubr.bf16.mxu0 0
    %205 = vmatmul.mubr.bf16.gmra.mrb[0].mxu0 %v88
    %v206 = vpop.f32.mrb[0].mxu0
    %v207 = vadd.f32 %v123, %v206
    %v208 = vpop.f32.mrb[0].mxu0
    %v209 = vpop.f32.mrb[0].mxu0
    %v210 = vadd.f32 %v123, %v209
    %v211 = vpop.f32.mrb[0].mxu0
    %212 = vmatprep.mubr.bf16.mxu0 0
    %213 = vmatmul.mubr.bf16.gmra.mrb[0].mxu0 %v89
    %v214 = vpop.f32.mrb[0].mxu0
    %v215 = vadd.f32 %v123, %v214
    %v216 = vpop.f32.mrb[0].mxu0
    %v217 = vpop.f32.mrb[0].mxu0
    %v218 = vadd.f32 %v123, %v217
    %v219 = vpop.f32.mrb[0].mxu0
    %220 = vmatprep.mubr.bf16.mxu0 0
    %221 = vmatmul.mubr.bf16.gmra.mrb[0].mxu0 %v90
    %v222 = vpop.f32.mrb[0].mxu0
    %v223 = vadd.f32 %v123, %v222
    %v224 = vpop.f32.mrb[0].mxu0
    %v225 = vpop.f32.mrb[0].mxu0
    %v226 = vadd.f32 %v123, %v225
    %v227 = vpop.f32.mrb[0].mxu0
    %228 = vmatprep.mubr.bf16.mxu0 0
    %229 = vmatmul.mubr.bf16.gmra.mrb[0].mxu0 %v91
    %v230 = vpop.f32.mrb[0].mxu0
    %v231 = vadd.f32 %v123, %v230
    %v232 = vpop.f32.mrb[0].mxu0
    %v233 = vpop.f32.mrb[0].mxu0
    %v234 = vadd.f32 %v123, %v233
    %v235 = vpop.f32.mrb[0].mxu0
    %236 = vmatprep.mubr.bf16.mxu0 0
    %237 = vmatmul.mubr.bf16.gmra.mrb[0].mxu0 %v92
    %v238 = vpop.f32.mrb[0].mxu0
    %v239 = vadd.f32 %v123, %v238
    %v240 = vpop.f32.mrb[0].mxu0
    %v241 = vpop.f32.mrb[0].mxu0
    %v242 = vadd.f32 %v123, %v241
    %v243 = vpop.f32.mrb[0].mxu0
    %244 = vmatprep.mubr.bf16.mxu0 0
    %245 = vmatmul.mubr.bf16.gmra.mrb[0].mxu0 %v93
    %v246 = vpop.f32.mrb[0].mxu0
    %v247 = vadd.f32 %v123, %v246
    %v248 = vpop.f32.mrb[0].mxu0
    %v249 = vpop.f32.mrb[0].mxu0
    %v250 = vadd.f32 %v123, %v249
    %v251 = vpop.f32.mrb[0].mxu0
    %252 = vmatprep.mubr.bf16.mxu0 0
    %253 = vmatmul.mubr.bf16.gmra.mrb[0].mxu0 %v94
    %v254 = vpop.f32.mrb[0].mxu0
    %v255 = vadd.f32 %v123, %v254
    %v256 = vpop.f32.mrb[0].mxu0
    %v257 = vpop.f32.mrb[0].mxu0
    %v258 = vadd.f32 %v123, %v257
    %v259 = vpop.f32.mrb[0].mxu0
    %260 = vmatprep.mubr.bf16.mxu0 0
    %261 = vmatmul.mubr.bf16.gmra.mrb[0].mxu0 %v95
    %v262 = vpop.f32.mrb[0].mxu0
    %v263 = vadd.f32 %v123, %v262
    %v264 = vpop.f32.mrb[0].mxu0
    %v265 = vpop.f32.mrb[0].mxu0
    %v266 = vadd.f32 %v123, %v265
    %v267 = vpop.f32.mrb[0].mxu0
    %268 = vmatprep.mubr.bf16.mxu0 0
    %269 = vmatmul.mubr.bf16.gmra.mrb[0].mxu0 %v96
    %v270 = vpop.f32.mrb[0].mxu0
    %v271 = vadd.f32 %v123, %v270
    %v272 = vpop.f32.mrb[0].mxu0
    %v273 = vpop.f32.mrb[0].mxu0
    %v274 = vadd.f32 %v123, %v273
    %v275 = vpop.f32.mrb[0].mxu0
    %276 = vmatprep.mubr.bf16.mxu0 0
    %277 = vmatmul.mubr.bf16.gmra.mrb[0].mxu0 %v97
    %v278 = vpop.f32.mrb[0].mxu0
    %v279 = vadd.f32 %v123, %v278
    %v280 = vpop.f32.mrb[0].mxu0
    %v281 = vpop.f32.mrb[0].mxu0
    %v282 = vadd.f32 %v123, %v281
    %v283 = vpop.f32.mrb[0].mxu0
    %284 = vmatprep.mubr.bf16.mxu0 0
    %285 = vmatmul.mubr.bf16.gmra.mrb[0].mxu0 %v98
    %v286 = vpop.f32.mrb[0].mxu0
    %v287 = vadd.f32 %v123, %v286
    %v288 = vpop.f32.mrb[0].mxu0
    %v289 = vpop.f32.mrb[0].mxu0
    %v290 = vadd.f32 %v123, %v289
    %v291 = vpop.f32.mrb[0].mxu0
    %292 = vmatprep.mubr.bf16.mxu0 0
    %293 = vmatmul.mubr.bf16.gmra.mrb[0].mxu0 %v99
    %v294 = vpop.f32.mrb[0].mxu0
    %v295 = vadd.f32 %v123, %v294
    %v296 = vpop.f32.mrb[0].mxu0
    %v297 = vpop.f32.mrb[0].mxu0
    %v298 = vadd.f32 %v123, %v297
    %v299 = vpop.f32.mrb[0].mxu0
    %300 = vmatprep.mubr.bf16.mxu0 0
    %301 = vmatmul.mubr.bf16.gmra.mrb[0].mxu0 %v100
    %v302 = vpop.f32.mrb[0].mxu0
    %v303 = vadd.f32 %v123, %v302
    %v304 = vpop.f32.mrb[0].mxu0
    %v305 = vpop.f32.mrb[0].mxu0
    %v306 = vadd.f32 %v123, %v305
    %v307 = vpop.f32.mrb[0].mxu0
    %308 = vmatprep.mubr.bf16.mxu0 0
    %309 = vmatmul.mubr.bf16.gmra.mrb[0].mxu0 %v101
    %v310 = vpop.f32.mrb[0].mxu0
    %v311 = vadd.f32 %v123, %v310
    %v312 = vpop.f32.mrb[0].mxu0
    %v313 = vpop.f32.mrb[0].mxu0
    %v314 = vadd.f32 %v123, %v313
    %v315 = vpop.f32.mrb[0].mxu0
    %316 = vmatprep.mubr.bf16.mxu0 0
    %317 = vmatmul.mubr.bf16.gmra.mrb[0].mxu0 %v102
    %v318 = vpop.f32.mrb[0].mxu0
    %v319 = vadd.f32 %v123, %v318
    %v320 = vpop.f32.mrb[0].mxu0
    %v321 = vpop.f32.mrb[0].mxu0
    %v322 = vadd.f32 %v123, %v321
    %v323 = vpop.f32.mrb[0].mxu0
    %324 = vmatprep.mubr.bf16.mxu0 0
    %325 = vmatmul.mubr.bf16.gmra.mrb[0].mxu0 %v103
    %v326 = vpop.f32.mrb[0].mxu0
    %v327 = vadd.f32 %v123, %v326
    %v328 = vpop.f32.mrb[0].mxu0
    %v329 = vpop.f32.mrb[0].mxu0
    %v330 = vadd.f32 %v123, %v329
    %v331 = vpop.f32.mrb[0].mxu0
    %332 = vdwg.mxu0
    %v333 = vmax.f32 %v207, 0.0
    %v334 = vmax.f32 %v210, 0.0
    %v335 = vmax.f32 %v215, 0.0
    %v336 = vmax.f32 %v218, 0.0
    %v337 = vmax.f32 %v223, 0.0
    %v338 = vmax.f32 %v226, 0.0
    %v339 = vmax.f32 %v231, 0.0
    %v340 = vmax.f32 %v234, 0.0
    %v341 = vmax.f32 %v239, 0.0
    %v342 = vmax.f32 %v242, 0.0
    %v343 = vmax.f32 %v247, 0.0
    %v344 = vmax.f32 %v250, 0.0
    %v345 = vmax.f32 %v255, 0.0
    %v346 = vmax.f32 %v258, 0.0
    %v347 = vmax.f32 %v263, 0.0
    %v348 = vmax.f32 %v266, 0.0
    %v349 = vmax.f32 %v271, 0.0
    %v350 = vmax.f32 %v274, 0.0
    %v351 = vmax.f32 %v279, 0.0
    %v352 = vmax.f32 %v282, 0.0
    %v353 = vmax.f32 %v287, 0.0
    %v354 = vmax.f32 %v290, 0.0
    %v355 = vmax.f32 %v295, 0.0
    %v356 = vmax.f32 %v298, 0.0
    %v357 = vmax.f32 %v303, 0.0
    %v358 = vmax.f32 %v306, 0.0
    %v359 = vmax.f32 %v311, 0.0
    %v360 = vmax.f32 %v314, 0.0
    %v361 = vmax.f32 %v319, 0.0
    %v362 = vmax.f32 %v322, 0.0
    %v363 = vmax.f32 %v327, 0.0
    %v364 = vmax.f32 %v330, 0.0
    %v365 = vpack.c.bf16 %v334, %v333
    %v366 = vpack.c.bf16 %v336, %v335
    %v367 = vpack.c.bf16 %v338, %v337
    %v368 = vpack.c.bf16 %v340, %v339
    %v369 = vpack.c.bf16 %v342, %v341
    %v370 = vpack.c.bf16 %v344, %v343
    %v371 = vpack.c.bf16 %v346, %v345
    %v372 = vpack.c.bf16 %v348, %v347
    %v373 = vpack.c.bf16 %v350, %v349
    %v374 = vpack.c.bf16 %v352, %v351
    %v375 = vpack.c.bf16 %v354, %v353
    %v376 = vpack.c.bf16 %v356, %v355
    %v377 = vpack.c.bf16 %v358, %v357
    %v378 = vpack.c.bf16 %v360, %v359
    %v379 = vpack.c.bf16 %v362, %v361
    %v380 = vpack.c.bf16 %v364, %v363
    %s381 = scalar_lea.vmem [#allocation5], 64
    %v382 = vld [vmem:[%s381] sm:$0xf]
    %v383 = vld [vmem:[%s381 + $0x4] sm:$0xf]
    %v384 = vld [vmem:[%s381 + $0x8] sm:$0xf]
    %v385 = vld [vmem:[%s381 + $0xc] sm:$0xf]
    %v386 = vld [vmem:[%s381 + $0x10] sm:$0xf]
    %v387 = vld [vmem:[%s381 + $0x14] sm:$0xf]
    %v388 = vld [vmem:[%s381 + $0x18] sm:$0xf]
    %v389 = vld [vmem:[%s381 + $0x1c] sm:$0xf]
    %v390 = vld [vmem:[%s381 + $0x20] sm:$0xf]
    %v391 = vld [vmem:[%s381 + $0x24] sm:$0xf]
    %v392 = vld [vmem:[%s381 + $0x28] sm:$0xf]
    %v393 = vld [vmem:[%s381 + $0x2c] sm:$0xf]
    %v394 = vld [vmem:[%s381 + $0x30] sm:$0xf]
    %v395 = vld [vmem:[%s381 + $0x34] sm:$0xf]
    %v396 = vld [vmem:[%s381 + $0x38] sm:$0xf]
    %v397 = vld [vmem:[%s381 + $0x3c] sm:$0xf]
    %v398 = vlaneseq
    %v399 = vshrl.u32 %v398, 7
    %v400 = vsub.s32 1, %v399
    %v401 = vrot.slane %v55, %v400
    %v418 = vunpack.c.l.b16 %v382
    %v419 = vunpack.c.l.b16 %v383
    %v420 = vunpack.c.l.b16 %v384
    %v421 = vunpack.c.l.b16 %v385
    %v422 = vunpack.c.l.b16 %v386
    %v423 = vunpack.c.l.b16 %v387
    %v424 = vunpack.c.l.b16 %v388
    %v425 = vunpack.c.l.b16 %v389
    %v426 = vunpack.c.l.b16 %v390
    %v427 = vunpack.c.l.b16 %v391
    %v428 = vunpack.c.l.b16 %v392
    %v429 = vunpack.c.l.b16 %v393
    %v430 = vunpack.c.l.b16 %v394
    %v431 = vunpack.c.l.b16 %v395
    %v432 = vunpack.c.l.b16 %v396
    %v433 = vunpack.c.l.b16 %v397
    %v434 = vpack.c.b16 %v419, %v418
    %v435 = vpack.c.b16 %v421, %v420
    %v436 = vpack.c.b16 %v423, %v422
    %v437 = vpack.c.b16 %v425, %v424
    %v438 = vpack.c.b16 %v427, %v426
    %v439 = vpack.c.b16 %v429, %v428
    %v440 = vpack.c.b16 %v431, %v430
    %v441 = vpack.c.b16 %v433, %v432
    %450 = vmatprep.subr.bf16.mxu0 0
    %451 = vmatpush1.bf16.msra.mxu0 %v434
    %452 = vmatprep.subr.bf16.mxu0 0
    %453 = vmatpush1.bf16.msra.mxu0 %v435
    %454 = vmatprep.subr.bf16.mxu0 0
    %455 = vmatpush1.bf16.msra.mxu0 %v436
    %456 = vmatprep.subr.bf16.mxu0 0
    %457 = vmatpush1.bf16.msra.mxu0 %v437
    %458 = vmatprep.subr.bf16.mxu0 0
    %459 = vmatpush1.bf16.msra.mxu0 %v438
    %460 = vmatprep.subr.bf16.mxu0 0
    %461 = vmatpush1.bf16.msra.mxu0 %v439
    %462 = vmatprep.subr.bf16.mxu0 0
    %463 = vmatpush1.bf16.msra.mxu0 %v440
    %464 = vmatprep.subr.bf16.mxu0 0
    %465 = vmatpush1.bf16.msra.mxu0 %v441
    %466 = vmatprep.subr.bf16.mxu0 0
    %467 = vmatpush1.bf16.msra.mxu0 0
    %468 = vmatprep.subr.bf16.mxu0 0
    %469 = vmatpush1.bf16.msra.mxu0 0
    %470 = vmatprep.subr.bf16.mxu0 0
    %471 = vmatpush1.bf16.msra.mxu0 0
    %472 = vmatprep.subr.bf16.mxu0 0
    %473 = vmatpush1.bf16.msra.mxu0 0
    %474 = vmatprep.subr.bf16.mxu0 0
    %475 = vmatpush1.bf16.msra.mxu0 0
    %476 = vmatprep.subr.bf16.mxu0 0
    %477 = vmatpush1.bf16.msra.mxu0 0
    %478 = vmatprep.subr.bf16.mxu0 0
    %479 = vmatpush1.bf16.msra.mxu0 0
    %480 = vmatprep.subr.bf16.mxu0 0
    %481 = vmatpush1.bf16.msra.mxu0 0
    %482 = vmatprep.mubr.bf16.mxu0 0
    %483 = vmatmul.mubr.bf16.gmra.mrb[0].mxu0 %v365
    %v484 = vpop.f32.mrb[0].mxu0
    %v485 = vadd.f32 %v401, %v484
    %v486 = vpop.f32.mrb[0].mxu0
    %v487 = vpop.f32.mrb[0].mxu0
    %v488 = vadd.f32 %v401, %v487
    %v489 = vpop.f32.mrb[0].mxu0
    %490 = vmatprep.mubr.bf16.mxu0 0
    %491 = vmatmul.mubr.bf16.gmra.mrb[0].mxu0 %v366
    %v492 = vpop.f32.mrb[0].mxu0
    %v493 = vadd.f32 %v401, %v492
    %v494 = vpop.f32.mrb[0].mxu0
    %v495 = vpop.f32.mrb[0].mxu0
    %v496 = vadd.f32 %v401, %v495
    %v497 = vpop.f32.mrb[0].mxu0
    %498 = vmatprep.mubr.bf16.mxu0 0
    %499 = vmatmul.mubr.bf16.gmra.mrb[0].mxu0 %v367
    %v500 = vpop.f32.mrb[0].mxu0
    %v501 = vadd.f32 %v401, %v500
    %v502 = vpop.f32.mrb[0].mxu0
    %v503 = vpop.f32.mrb[0].mxu0
    %v504 = vadd.f32 %v401, %v503
    %v505 = vpop.f32.mrb[0].mxu0
    %506 = vmatprep.mubr.bf16.mxu0 0
    %507 = vmatmul.mubr.bf16.gmra.mrb[0].mxu0 %v368
    %v508 = vpop.f32.mrb[0].mxu0
    %v509 = vadd.f32 %v401, %v508
    %v510 = vpop.f32.mrb[0].mxu0
    %v511 = vpop.f32.mrb[0].mxu0
    %v512 = vadd.f32 %v401, %v511
    %v513 = vpop.f32.mrb[0].mxu0
    %514 = vmatprep.mubr.bf16.mxu0 0
    %515 = vmatmul.mubr.bf16.gmra.mrb[0].mxu0 %v369
    %v516 = vpop.f32.mrb[0].mxu0
    %v517 = vadd.f32 %v401, %v516
    %v518 = vpop.f32.mrb[0].mxu0
    %v519 = vpop.f32.mrb[0].mxu0
    %v520 = vadd.f32 %v401, %v519
    %v521 = vpop.f32.mrb[0].mxu0
    %522 = vmatprep.mubr.bf16.mxu0 0
    %523 = vmatmul.mubr.bf16.gmra.mrb[0].mxu0 %v370
    %v524 = vpop.f32.mrb[0].mxu0
    %v525 = vadd.f32 %v401, %v524
    %v526 = vpop.f32.mrb[0].mxu0
    %v527 = vpop.f32.mrb[0].mxu0
    %v528 = vadd.f32 %v401, %v527
    %v529 = vpop.f32.mrb[0].mxu0
    %530 = vmatprep.mubr.bf16.mxu0 0
    %531 = vmatmul.mubr.bf16.gmra.mrb[0].mxu0 %v371
    %v532 = vpop.f32.mrb[0].mxu0
    %v533 = vadd.f32 %v401, %v532
    %v534 = vpop.f32.mrb[0].mxu0
    %v535 = vpop.f32.mrb[0].mxu0
    %v536 = vadd.f32 %v401, %v535
    %v537 = vpop.f32.mrb[0].mxu0
    %538 = vmatprep.mubr.bf16.mxu0 0
    %539 = vmatmul.mubr.bf16.gmra.mrb[0].mxu0 %v372
    %v540 = vpop.f32.mrb[0].mxu0
    %v541 = vadd.f32 %v401, %v540
    %v542 = vpop.f32.mrb[0].mxu0
    %v543 = vpop.f32.mrb[0].mxu0
    %v544 = vadd.f32 %v401, %v543
    %v545 = vpop.f32.mrb[0].mxu0
    %546 = vmatprep.mubr.bf16.mxu0 0
    %547 = vmatmul.mubr.bf16.gmra.mrb[0].mxu0 %v373
    %v548 = vpop.f32.mrb[0].mxu0
    %v549 = vadd.f32 %v401, %v548
    %v550 = vpop.f32.mrb[0].mxu0
    %v551 = vpop.f32.mrb[0].mxu0
    %v552 = vadd.f32 %v401, %v551
    %v553 = vpop.f32.mrb[0].mxu0
    %554 = vmatprep.mubr.bf16.mxu0 0
    %555 = vmatmul.mubr.bf16.gmra.mrb[0].mxu0 %v374
    %v556 = vpop.f32.mrb[0].mxu0
    %v557 = vadd.f32 %v401, %v556
    %v558 = vpop.f32.mrb[0].mxu0
    %v559 = vpop.f32.mrb[0].mxu0
    %v560 = vadd.f32 %v401, %v559
    %v561 = vpop.f32.mrb[0].mxu0
    %562 = vmatprep.mubr.bf16.mxu0 0
    %563 = vmatmul.mubr.bf16.gmra.mrb[0].mxu0 %v375
    %v564 = vpop.f32.mrb[0].mxu0
    %v565 = vadd.f32 %v401, %v564
    %v566 = vpop.f32.mrb[0].mxu0
    %v567 = vpop.f32.mrb[0].mxu0
    %v568 = vadd.f32 %v401, %v567
    %v569 = vpop.f32.mrb[0].mxu0
    %570 = vmatprep.mubr.bf16.mxu0 0
    %571 = vmatmul.mubr.bf16.gmra.mrb[0].mxu0 %v376
    %v572 = vpop.f32.mrb[0].mxu0
    %v573 = vadd.f32 %v401, %v572
    %v574 = vpop.f32.mrb[0].mxu0
    %v575 = vpop.f32.mrb[0].mxu0
    %v576 = vadd.f32 %v401, %v575
    %v577 = vpop.f32.mrb[0].mxu0
    %578 = vmatprep.mubr.bf16.mxu0 0
    %579 = vmatmul.mubr.bf16.gmra.mrb[0].mxu0 %v377
    %v580 = vpop.f32.mrb[0].mxu0
    %v581 = vadd.f32 %v401, %v580
    %v582 = vpop.f32.mrb[0].mxu0
    %v583 = vpop.f32.mrb[0].mxu0
    %v584 = vadd.f32 %v401, %v583
    %v585 = vpop.f32.mrb[0].mxu0
    %586 = vmatprep.mubr.bf16.mxu0 0
    %587 = vmatmul.mubr.bf16.gmra.mrb[0].mxu0 %v378
    %v588 = vpop.f32.mrb[0].mxu0
    %v589 = vadd.f32 %v401, %v588
    %v590 = vpop.f32.mrb[0].mxu0
    %v591 = vpop.f32.mrb[0].mxu0
    %v592 = vadd.f32 %v401, %v591
    %v593 = vpop.f32.mrb[0].mxu0
    %594 = vmatprep.mubr.bf16.mxu0 0
    %595 = vmatmul.mubr.bf16.gmra.mrb[0].mxu0 %v379
    %v596 = vpop.f32.mrb[0].mxu0
    %v597 = vadd.f32 %v401, %v596
    %v598 = vpop.f32.mrb[0].mxu0
    %v599 = vpop.f32.mrb[0].mxu0
    %v600 = vadd.f32 %v401, %v599
    %v601 = vpop.f32.mrb[0].mxu0
    %602 = vmatprep.mubr.bf16.mxu0 0
    %603 = vmatmul.mubr.bf16.gmra.mrb[0].mxu0 %v380
    %v604 = vpop.f32.mrb[0].mxu0
    %v605 = vadd.f32 %v401, %v604
    %v606 = vpop.f32.mrb[0].mxu0
    %v607 = vpop.f32.mrb[0].mxu0
    %v608 = vadd.f32 %v401, %v607
    %v609 = vpop.f32.mrb[0].mxu0
    %610 = vdwg.mxu0
    %v611 = vmax.f32 %v485, 0.0
    %v612 = vmax.f32 %v488, 0.0
    %v613 = vmax.f32 %v493, 0.0
    %v614 = vmax.f32 %v496, 0.0
    %v615 = vmax.f32 %v501, 0.0
    %v616 = vmax.f32 %v504, 0.0
    %v617 = vmax.f32 %v509, 0.0
    %v618 = vmax.f32 %v512, 0.0
    %v619 = vmax.f32 %v517, 0.0
    %v620 = vmax.f32 %v520, 0.0
    %v621 = vmax.f32 %v525, 0.0
    %v622 = vmax.f32 %v528, 0.0
    %v623 = vmax.f32 %v533, 0.0
    %v624 = vmax.f32 %v536, 0.0
    %v625 = vmax.f32 %v541, 0.0
    %v626 = vmax.f32 %v544, 0.0
    %v627 = vmax.f32 %v549, 0.0
    %v628 = vmax.f32 %v552, 0.0
    %v629 = vmax.f32 %v557, 0.0
    %v630 = vmax.f32 %v560, 0.0
    %v631 = vmax.f32 %v565, 0.0
    %v632 = vmax.f32 %v568, 0.0
    %v633 = vmax.f32 %v573, 0.0
    %v634 = vmax.f32 %v576, 0.0
    %v635 = vmax.f32 %v581, 0.0
    %v636 = vmax.f32 %v584, 0.0
    %v637 = vmax.f32 %v589, 0.0
    %v638 = vmax.f32 %v592, 0.0
    %v639 = vmax.f32 %v597, 0.0
    %v640 = vmax.f32 %v600, 0.0
    %v641 = vmax.f32 %v605, 0.0
    %v642 = vmax.f32 %v608, 0.0
    %v643 = vpack.c.bf16 %v612, %v611
    %v644 = vpack.c.bf16 %v614, %v613
    %v645 = vpack.c.bf16 %v616, %v615
    %v646 = vpack.c.bf16 %v618, %v617
    %v647 = vpack.c.bf16 %v620, %v619
    %v648 = vpack.c.bf16 %v622, %v621
    %v649 = vpack.c.bf16 %v624, %v623
    %v650 = vpack.c.bf16 %v626, %v625
    %v651 = vpack.c.bf16 %v628, %v627
    %v652 = vpack.c.bf16 %v630, %v629
    %v653 = vpack.c.bf16 %v632, %v631
    %v654 = vpack.c.bf16 %v634, %v633
    %v655 = vpack.c.bf16 %v636, %v635
    %v656 = vpack.c.bf16 %v638, %v637
    %v657 = vpack.c.bf16 %v640, %v639
    %v658 = vpack.c.bf16 %v642, %v641
    %s659 = scalar_lea.vmem [#allocation5], 128
    %v660 = vld [vmem:[%s659] sm:$0xf]
    %v661 = vld [vmem:[%s659 + $0x4] sm:$0xf]
    %v662 = vld [vmem:[%s659 + $0x8] sm:$0xf]
    %v663 = vld [vmem:[%s659 + $0xc] sm:$0xf]
    %v664 = vld [vmem:[%s659 + $0x10] sm:$0xf]
    %v665 = vld [vmem:[%s659 + $0x14] sm:$0xf]
    %v666 = vld [vmem:[%s659 + $0x18] sm:$0xf]
    %v667 = vld [vmem:[%s659 + $0x1c] sm:$0xf]
    %v668 = vld [vmem:[%s659 + $0x20] sm:$0xf]
    %v669 = vld [vmem:[%s659 + $0x24] sm:$0xf]
    %v670 = vld [vmem:[%s659 + $0x28] sm:$0xf]
    %v671 = vld [vmem:[%s659 + $0x2c] sm:$0xf]
    %v672 = vld [vmem:[%s659 + $0x30] sm:$0xf]
    %v673 = vld [vmem:[%s659 + $0x34] sm:$0xf]
    %v674 = vld [vmem:[%s659 + $0x38] sm:$0xf]
    %v675 = vld [vmem:[%s659 + $0x3c] sm:$0xf]
    %v676 = vlaneseq
    %v677 = vshrl.u32 %v676, 7
    %v678 = vsub.s32 2, %v677
    %v679 = vrot.slane %v55, %v678
    %v696 = vunpack.c.l.b16 %v660
    %v697 = vunpack.c.l.b16 %v661
    %v698 = vunpack.c.l.b16 %v662
    %v699 = vunpack.c.l.b16 %v663
    %v700 = vunpack.c.l.b16 %v664
    %v701 = vunpack.c.l.b16 %v665
    %v702 = vunpack.c.l.b16 %v666
    %v703 = vunpack.c.l.b16 %v667
    %v704 = vunpack.c.l.b16 %v668
    %v705 = vunpack.c.l.b16 %v669
    %v706 = vunpack.c.l.b16 %v670
    %v707 = vunpack.c.l.b16 %v671
    %v708 = vunpack.c.l.b16 %v672
    %v709 = vunpack.c.l.b16 %v673
    %v710 = vunpack.c.l.b16 %v674
    %v711 = vunpack.c.l.b16 %v675
    %v712 = vpack.c.b16 %v697, %v696
    %v713 = vpack.c.b16 %v699, %v698
    %v714 = vpack.c.b16 %v701, %v700
    %v715 = vpack.c.b16 %v703, %v702
    %v716 = vpack.c.b16 %v705, %v704
    %v717 = vpack.c.b16 %v707, %v706
    %v718 = vpack.c.b16 %v709, %v708
    %v719 = vpack.c.b16 %v711, %v710
    %728 = vmatprep.subr.bf16.mxu0 0
    %729 = vmatpush1.bf16.msra.mxu0 %v712
    %730 = vmatprep.subr.bf16.mxu0 0
    %731 = vmatpush1.bf16.msra.mxu0 %v713
    %732 = vmatprep.subr.bf16.mxu0 0
    %733 = vmatpush1.bf16.msra.mxu0 %v714
    %734 = vmatprep.subr.bf16.mxu0 0
    %735 = vmatpush1.bf16.msra.mxu0 %v715
    %736 = vmatprep.subr.bf16.mxu0 0
    %737 = vmatpush1.bf16.msra.mxu0 %v716
    %738 = vmatprep.subr.bf16.mxu0 0
    %739 = vmatpush1.bf16.msra.mxu0 %v717
    %740 = vmatprep.subr.bf16.mxu0 0
    %741 = vmatpush1.bf16.msra.mxu0 %v718
    %742 = vmatprep.subr.bf16.mxu0 0
    %743 = vmatpush1.bf16.msra.mxu0 %v719
    %744 = vmatprep.subr.bf16.mxu0 0
    %745 = vmatpush1.bf16.msra.mxu0 0
    %746 = vmatprep.subr.bf16.mxu0 0
    %747 = vmatpush1.bf16.msra.mxu0 0
    %748 = vmatprep.subr.bf16.mxu0 0
    %749 = vmatpush1.bf16.msra.mxu0 0
    %750 = vmatprep.subr.bf16.mxu0 0
    %751 = vmatpush1.bf16.msra.mxu0 0
    %752 = vmatprep.subr.bf16.mxu0 0
    %753 = vmatpush1.bf16.msra.mxu0 0
    %754 = vmatprep.subr.bf16.mxu0 0
    %755 = vmatpush1.bf16.msra.mxu0 0
    %756 = vmatprep.subr.bf16.mxu0 0
    %757 = vmatpush1.bf16.msra.mxu0 0
    %758 = vmatprep.subr.bf16.mxu0 0
    %759 = vmatpush1.bf16.msra.mxu0 0
    %760 = vmatprep.mubr.bf16.mxu0 0
    %761 = vmatmul.mubr.bf16.gmra.mrb[0].mxu0 %v643
    %v762 = vpop.f32.mrb[0].mxu0
    %v763 = vadd.f32 %v679, %v762
    %v764 = vpop.f32.mrb[0].mxu0
    %v765 = vpop.f32.mrb[0].mxu0
    %v766 = vadd.f32 %v679, %v765
    %v767 = vpop.f32.mrb[0].mxu0
    %768 = vmatprep.mubr.bf16.mxu0 0
    %769 = vmatmul.mubr.bf16.gmra.mrb[0].mxu0 %v644
    %v770 = vpop.f32.mrb[0].mxu0
    %v771 = vadd.f32 %v679, %v770
    %v772 = vpop.f32.mrb[0].mxu0
    %v773 = vpop.f32.mrb[0].mxu0
    %v774 = vadd.f32 %v679, %v773
    %v775 = vpop.f32.mrb[0].mxu0
    %776 = vmatprep.mubr.bf16.mxu0 0
    %777 = vmatmul.mubr.bf16.gmra.mrb[0].mxu0 %v645
    %v778 = vpop.f32.mrb[0].mxu0
    %v779 = vadd.f32 %v679, %v778
    %v780 = vpop.f32.mrb[0].mxu0
    %v781 = vpop.f32.mrb[0].mxu0
    %v782 = vadd.f32 %v679, %v781
    %v783 = vpop.f32.mrb[0].mxu0
    %784 = vmatprep.mubr.bf16.mxu0 0
    %785 = vmatmul.mubr.bf16.gmra.mrb[0].mxu0 %v646
    %v786 = vpop.f32.mrb[0].mxu0
    %v787 = vadd.f32 %v679, %v786
    %v788 = vpop.f32.mrb[0].mxu0
    %v789 = vpop.f32.mrb[0].mxu0
    %v790 = vadd.f32 %v679, %v789
    %v791 = vpop.f32.mrb[0].mxu0
    %792 = vmatprep.mubr.bf16.mxu0 0
    %793 = vmatmul.mubr.bf16.gmra.mrb[0].mxu0 %v647
    %v794 = vpop.f32.mrb[0].mxu0
    %v795 = vadd.f32 %v679, %v794
    %v796 = vpop.f32.mrb[0].mxu0
    %v797 = vpop.f32.mrb[0].mxu0
    %v798 = vadd.f32 %v679, %v797
    %v799 = vpop.f32.mrb[0].mxu0
    %800 = vmatprep.mubr.bf16.mxu0 0
    %801 = vmatmul.mubr.bf16.gmra.mrb[0].mxu0 %v648
    %v802 = vpop.f32.mrb[0].mxu0
    %v803 = vadd.f32 %v679, %v802
    %v804 = vpop.f32.mrb[0].mxu0
    %v805 = vpop.f32.mrb[0].mxu0
    %v806 = vadd.f32 %v679, %v805
    %v807 = vpop.f32.mrb[0].mxu0
    %808 = vmatprep.mubr.bf16.mxu0 0
    %809 = vmatmul.mubr.bf16.gmra.mrb[0].mxu0 %v649
    %v810 = vpop.f32.mrb[0].mxu0
    %v811 = vadd.f32 %v679, %v810
    %v812 = vpop.f32.mrb[0].mxu0
    %v813 = vpop.f32.mrb[0].mxu0
    %v814 = vadd.f32 %v679, %v813
    %v815 = vpop.f32.mrb[0].mxu0
    %816 = vmatprep.mubr.bf16.mxu0 0
    %817 = vmatmul.mubr.bf16.gmra.mrb[0].mxu0 %v650
    %v818 = vpop.f32.mrb[0].mxu0
    %v819 = vadd.f32 %v679, %v818
    %v820 = vpop.f32.mrb[0].mxu0
    %v821 = vpop.f32.mrb[0].mxu0
    %v822 = vadd.f32 %v679, %v821
    %v823 = vpop.f32.mrb[0].mxu0
    %824 = vmatprep.mubr.bf16.mxu0 0
    %825 = vmatmul.mubr.bf16.gmra.mrb[0].mxu0 %v651
    %v826 = vpop.f32.mrb[0].mxu0
    %v827 = vadd.f32 %v679, %v826
    %v828 = vpop.f32.mrb[0].mxu0
    %v829 = vpop.f32.mrb[0].mxu0
    %v830 = vadd.f32 %v679, %v829
    %v831 = vpop.f32.mrb[0].mxu0
    %832 = vmatprep.mubr.bf16.mxu0 0
    %833 = vmatmul.mubr.bf16.gmra.mrb[0].mxu0 %v652
    %v834 = vpop.f32.mrb[0].mxu0
    %v835 = vadd.f32 %v679, %v834
    %v836 = vpop.f32.mrb[0].mxu0
    %v837 = vpop.f32.mrb[0].mxu0
    %v838 = vadd.f32 %v679, %v837
    %v839 = vpop.f32.mrb[0].mxu0
    %840 = vmatprep.mubr.bf16.mxu0 0
    %841 = vmatmul.mubr.bf16.gmra.mrb[0].mxu0 %v653
    %v842 = vpop.f32.mrb[0].mxu0
    %v843 = vadd.f32 %v679, %v842
    %v844 = vpop.f32.mrb[0].mxu0
    %v845 = vpop.f32.mrb[0].mxu0
    %v846 = vadd.f32 %v679, %v845
    %v847 = vpop.f32.mrb[0].mxu0
    %848 = vmatprep.mubr.bf16.mxu0 0
    %849 = vmatmul.mubr.bf16.gmra.mrb[0].mxu0 %v654
    %v850 = vpop.f32.mrb[0].mxu0
    %v851 = vadd.f32 %v679, %v850
    %v852 = vpop.f32.mrb[0].mxu0
    %v853 = vpop.f32.mrb[0].mxu0
    %v854 = vadd.f32 %v679, %v853
    %v855 = vpop.f32.mrb[0].mxu0
    %856 = vmatprep.mubr.bf16.mxu0 0
    %857 = vmatmul.mubr.bf16.gmra.mrb[0].mxu0 %v655
    %v858 = vpop.f32.mrb[0].mxu0
    %v859 = vadd.f32 %v679, %v858
    %v860 = vpop.f32.mrb[0].mxu0
    %v861 = vpop.f32.mrb[0].mxu0
    %v862 = vadd.f32 %v679, %v861
    %v863 = vpop.f32.mrb[0].mxu0
    %864 = vmatprep.mubr.bf16.mxu0 0
    %865 = vmatmul.mubr.bf16.gmra.mrb[0].mxu0 %v656
    %v866 = vpop.f32.mrb[0].mxu0
    %v867 = vadd.f32 %v679, %v866
    %v868 = vpop.f32.mrb[0].mxu0
    %v869 = vpop.f32.mrb[0].mxu0
    %v870 = vadd.f32 %v679, %v869
    %v871 = vpop.f32.mrb[0].mxu0
    %872 = vmatprep.mubr.bf16.mxu0 0
    %873 = vmatmul.mubr.bf16.gmra.mrb[0].mxu0 %v657
    %v874 = vpop.f32.mrb[0].mxu0
    %v875 = vadd.f32 %v679, %v874
    %v876 = vpop.f32.mrb[0].mxu0
    %v877 = vpop.f32.mrb[0].mxu0
    %v878 = vadd.f32 %v679, %v877
    %v879 = vpop.f32.mrb[0].mxu0
    %880 = vmatprep.mubr.bf16.mxu0 0
    %881 = vmatmul.mubr.bf16.gmra.mrb[0].mxu0 %v658
    %v882 = vpop.f32.mrb[0].mxu0
    %v883 = vadd.f32 %v679, %v882
    %v884 = vpop.f32.mrb[0].mxu0
    %v885 = vpop.f32.mrb[0].mxu0
    %v886 = vadd.f32 %v679, %v885
    %v887 = vpop.f32.mrb[0].mxu0
    %888 = vdwg.mxu0
    %889 = vst [vmem:[#allocation8] sm:$0xff] %v763
    %890 = vst [vmem:[#allocation8 + $0x8] sm:$0xff] %v766
    %891 = vst [vmem:[#allocation8 + $0x10] sm:$0xff] %v771
    %892 = vst [vmem:[#allocation8 + $0x18] sm:$0xff] %v774
    %893 = vst [vmem:[#allocation8 + $0x20] sm:$0xff] %v779
    %894 = vst [vmem:[#allocation8 + $0x28] sm:$0xff] %v782
    %895 = vst [vmem:[#allocation8 + $0x30] sm:$0xff] %v787
    %896 = vst [vmem:[#allocation8 + $0x38] sm:$0xff] %v790
    %897 = vst [vmem:[#allocation8 + $0x40] sm:$0xff] %v795
    %898 = vst [vmem:[#allocation8 + $0x48] sm:$0xff] %v798
    %899 = vst [vmem:[#allocation8 + $0x50] sm:$0xff] %v803
    %900 = vst [vmem:[#allocation8 + $0x58] sm:$0xff] %v806
    %901 = vst [vmem:[#allocation8 + $0x60] sm:$0xff] %v811
    %902 = vst [vmem:[#allocation8 + $0x68] sm:$0xff] %v814
    %903 = vst [vmem:[#allocation8 + $0x70] sm:$0xff] %v819
    %904 = vst [vmem:[#allocation8 + $0x78] sm:$0xff] %v822
    %905 = vst [vmem:[#allocation8 + $0x80] sm:$0xff] %v827
    %906 = vst [vmem:[#allocation8 + $0x88] sm:$0xff] %v830
    %907 = vst [vmem:[#allocation8 + $0x90] sm:$0xff] %v835
    %908 = vst [vmem:[#allocation8 + $0x98] sm:$0xff] %v838
    %909 = vst [vmem:[#allocation8 + $0xa0] sm:$0xff] %v843
    %910 = vst [vmem:[#allocation8 + $0xa8] sm:$0xff] %v846
    %911 = vst [vmem:[#allocation8 + $0xb0] sm:$0xff] %v851
    %912 = vst [vmem:[#allocation8 + $0xb8] sm:$0xff] %v854
    %913 = vst [vmem:[#allocation8 + $0xc0] sm:$0xff] %v859
    %914 = vst [vmem:[#allocation8 + $0xc8] sm:$0xff] %v862
    %915 = vst [vmem:[#allocation8 + $0xd0] sm:$0xff] %v867
    %916 = vst [vmem:[#allocation8 + $0xd8] sm:$0xff] %v870
    %917 = vst [vmem:[#allocation8 + $0xe0] sm:$0xff] %v875
    %918 = vst [vmem:[#allocation8 + $0xe8] sm:$0xff] %v878
    %919 = vst [vmem:[#allocation8 + $0xf0] sm:$0xff] %v883
    %920 = vst [vmem:[#allocation8 + $0xf8] sm:$0xff] %v886
    %921 = vrot.lane.b32.xlu0 %v763, 64
    %v922 = vpop.permute.xlu0 %921
    %923 = vrot.lane.b32.xlu0 %v766, 64
    %v924 = vpop.permute.xlu0 %923
    %925 = vrot.lane.b32.xlu0 %v771, 64
    %v926 = vpop.permute.xlu0 %925
    %927 = vrot.lane.b32.xlu0 %v774, 64
    %v928 = vpop.permute.xlu0 %927
    %929 = vrot.lane.b32.xlu0 %v779, 64
    %v930 = vpop.permute.xlu0 %929
    %931 = vrot.lane.b32.xlu0 %v782, 64
    %v932 = vpop.permute.xlu0 %931
    %933 = vrot.lane.b32.xlu0 %v787, 64
    %v934 = vpop.permute.xlu0 %933
    %935 = vrot.lane.b32.xlu0 %v790, 64
    %v936 = vpop.permute.xlu0 %935
    %937 = vrot.lane.b32.xlu0 %v795, 64
    %v938 = vpop.permute.xlu0 %937
    %939 = vrot.lane.b32.xlu0 %v798, 64
    %v940 = vpop.permute.xlu0 %939
    %941 = vrot.lane.b32.xlu0 %v803, 64
    %v942 = vpop.permute.xlu0 %941
    %943 = vrot.lane.b32.xlu0 %v806, 64
    %v944 = vpop.permute.xlu0 %943
    %945 = vrot.lane.b32.xlu0 %v811, 64
    %v946 = vpop.permute.xlu0 %945
    %947 = vrot.lane.b32.xlu0 %v814, 64
    %v948 = vpop.permute.xlu0 %947
    %949 = vrot.lane.b32.xlu0 %v819, 64
    %v950 = vpop.permute.xlu0 %949
    %951 = vrot.lane.b32.xlu0 %v822, 64
    %v952 = vpop.permute.xlu0 %951
    %953 = vrot.lane.b32.xlu0 %v827, 64
    %v954 = vpop.permute.xlu0 %953
    %955 = vrot.lane.b32.xlu0 %v830, 64
    %v956 = vpop.permute.xlu0 %955
    %957 = vrot.lane.b32.xlu0 %v835, 64
    %v958 = vpop.permute.xlu0 %957
    %959 = vrot.lane.b32.xlu0 %v838, 64
    %v960 = vpop.permute.xlu0 %959
    %961 = vrot.lane.b32.xlu0 %v843, 64
    %v962 = vpop.permute.xlu0 %961
    %963 = vrot.lane.b32.xlu0 %v846, 64
    %v964 = vpop.permute.xlu0 %963
    %965 = vrot.lane.b32.xlu0 %v851, 64
    %v966 = vpop.permute.xlu0 %965
    %967 = vrot.lane.b32.xlu0 %v854, 64
    %v968 = vpop.permute.xlu0 %967
    %969 = vrot.lane.b32.xlu0 %v859, 64
    %v970 = vpop.permute.xlu0 %969
    %971 = vrot.lane.b32.xlu0 %v862, 64
    %v972 = vpop.permute.xlu0 %971
    %973 = vrot.lane.b32.xlu0 %v867, 64
    %v974 = vpop.permute.xlu0 %973
    %975 = vrot.lane.b32.xlu0 %v870, 64
    %v976 = vpop.permute.xlu0 %975
    %977 = vrot.lane.b32.xlu0 %v875, 64
    %v978 = vpop.permute.xlu0 %977
    %979 = vrot.lane.b32.xlu0 %v878, 64
    %v980 = vpop.permute.xlu0 %979
    %981 = vrot.lane.b32.xlu0 %v883, 64
    %v982 = vpop.permute.xlu0 %981
    %983 = vrot.lane.b32.xlu0 %v886, 64
    %v984 = vpop.permute.xlu0 %983
    %v985 = vmul.f32 %v922, 0.5
    %v986 = vmul.f32 %v924, 0.5
    %v987 = vmul.f32 %v926, 0.5
    %v988 = vmul.f32 %v928, 0.5
    %v989 = vmul.f32 %v930, 0.5
    %v990 = vmul.f32 %v932, 0.5
    %v991 = vmul.f32 %v934, 0.5
    %v992 = vmul.f32 %v936, 0.5
    %v993 = vmul.f32 %v938, 0.5
    %v994 = vmul.f32 %v940, 0.5
    %v995 = vmul.f32 %v942, 0.5
    %v996 = vmul.f32 %v944, 0.5
    %v997 = vmul.f32 %v946, 0.5
    %v998 = vmul.f32 %v948, 0.5
    %v999 = vmul.f32 %v950, 0.5
    %v1000 = vmul.f32 %v952, 0.5
    %v1001 = vmul.f32 %v954, 0.5
    %v1002 = vmul.f32 %v956, 0.5
    %v1003 = vmul.f32 %v958, 0.5
    %v1004 = vmul.f32 %v960, 0.5
    %v1005 = vmul.f32 %v962, 0.5
    %v1006 = vmul.f32 %v964, 0.5
    %v1007 = vmul.f32 %v966, 0.5
    %v1008 = vmul.f32 %v968, 0.5
    %v1009 = vmul.f32 %v970, 0.5
    %v1010 = vmul.f32 %v972, 0.5
    %v1011 = vmul.f32 %v974, 0.5
    %v1012 = vmul.f32 %v976, 0.5
    %v1013 = vmul.f32 %v978, 0.5
    %v1014 = vmul.f32 %v980, 0.5
    %v1015 = vmul.f32 %v982, 0.5
    %v1016 = vmul.f32 %v984, 0.5
    %v1017 = vmul.f32 %v985, 1.442695
    %v1018 = vpow.pop %v1017
    %v1019 = vmul.f32 %v986, 1.442695
    %v1020 = vpow.pop %v1019
    %v1021 = vmul.f32 %v987, 1.442695
    %v1022 = vpow.pop %v1021
    %v1023 = vmul.f32 %v988, 1.442695
    %v1024 = vpow.pop %v1023
    %v1025 = vmul.f32 %v989, 1.442695
    %v1026 = vpow.pop %v1025
    %v1027 = vmul.f32 %v990, 1.442695
    %v1028 = vpow.pop %v1027
    %v1029 = vmul.f32 %v991, 1.442695
    %v1030 = vpow.pop %v1029
    %v1031 = vmul.f32 %v992, 1.442695
    %v1032 = vpow.pop %v1031
    %v1033 = vmul.f32 %v993, 1.442695
    %v1034 = vpow.pop %v1033
    %v1035 = vmul.f32 %v994, 1.442695
    %v1036 = vpow.pop %v1035
    %v1037 = vmul.f32 %v995, 1.442695
    %v1038 = vpow.pop %v1037
    %v1039 = vmul.f32 %v996, 1.442695
    %v1040 = vpow.pop %v1039
    %v1041 = vmul.f32 %v997, 1.442695
    %v1042 = vpow.pop %v1041
    %v1043 = vmul.f32 %v998, 1.442695
    %v1044 = vpow.pop %v1043
    %v1045 = vmul.f32 %v999, 1.442695
    %v1046 = vpow.pop %v1045
    %v1047 = vmul.f32 %v1000, 1.442695
    %v1048 = vpow.pop %v1047
    %v1049 = vmul.f32 %v1001, 1.442695
    %v1050 = vpow.pop %v1049
    %v1051 = vmul.f32 %v1002, 1.442695
    %v1052 = vpow.pop %v1051
    %v1053 = vmul.f32 %v1003, 1.442695
    %v1054 = vpow.pop %v1053
    %v1055 = vmul.f32 %v1004, 1.442695
    %v1056 = vpow.pop %v1055
    %v1057 = vmul.f32 %v1005, 1.442695
    %v1058 = vpow.pop %v1057
    %v1059 = vmul.f32 %v1006, 1.442695
    %v1060 = vpow.pop %v1059
    %v1061 = vmul.f32 %v1007, 1.442695
    %v1062 = vpow.pop %v1061
    %v1063 = vmul.f32 %v1008, 1.442695
    %v1064 = vpow.pop %v1063
    %v1065 = vmul.f32 %v1009, 1.442695
    %v1066 = vpow.pop %v1065
    %v1067 = vmul.f32 %v1010, 1.442695
    %v1068 = vpow.pop %v1067
    %v1069 = vmul.f32 %v1011, 1.442695
    %v1070 = vpow.pop %v1069
    %v1071 = vmul.f32 %v1012, 1.442695
    %v1072 = vpow.pop %v1071
    %v1073 = vmul.f32 %v1013, 1.442695
    %v1074 = vpow.pop %v1073
    %v1075 = vmul.f32 %v1014, 1.442695
    %v1076 = vpow.pop %v1075
    %v1077 = vmul.f32 %v1015, 1.442695
    %v1078 = vpow.pop %v1077
    %v1079 = vmul.f32 %v1016, 1.442695
    %v1080 = vpow.pop %v1079
    %v1081 = vld [vmem:[#allocation2] sm:$0xff]
    %v1082 = vld [vmem:[#allocation2 + $0x8] sm:$0xff]
    %v1083 = vld [vmem:[#allocation2 + $0x10] sm:$0xff]
    %v1084 = vld [vmem:[#allocation2 + $0x18] sm:$0xff]
    %v1085 = vld [vmem:[#allocation2 + $0x20] sm:$0xff]
    %v1086 = vld [vmem:[#allocation2 + $0x28] sm:$0xff]
    %v1087 = vld [vmem:[#allocation2 + $0x30] sm:$0xff]
    %v1088 = vld [vmem:[#allocation2 + $0x38] sm:$0xff]
    %v1089 = vld [vmem:[#allocation2 + $0x40] sm:$0xff]
    %v1090 = vld [vmem:[#allocation2 + $0x48] sm:$0xff]
    %v1091 = vld [vmem:[#allocation2 + $0x50] sm:$0xff]
    %v1092 = vld [vmem:[#allocation2 + $0x58] sm:$0xff]
    %v1093 = vld [vmem:[#allocation2 + $0x60] sm:$0xff]
    %v1094 = vld [vmem:[#allocation2 + $0x68] sm:$0xff]
    %v1095 = vld [vmem:[#allocation2 + $0x70] sm:$0xff]
    %v1096 = vld [vmem:[#allocation2 + $0x78] sm:$0xff]
    %v1097 = vld [vmem:[#allocation2 + $0x80] sm:$0xff]
    %v1098 = vld [vmem:[#allocation2 + $0x88] sm:$0xff]
    %v1099 = vld [vmem:[#allocation2 + $0x90] sm:$0xff]
    %v1100 = vld [vmem:[#allocation2 + $0x98] sm:$0xff]
    %v1101 = vld [vmem:[#allocation2 + $0xa0] sm:$0xff]
    %v1102 = vld [vmem:[#allocation2 + $0xa8] sm:$0xff]
    %v1103 = vld [vmem:[#allocation2 + $0xb0] sm:$0xff]
    %v1104 = vld [vmem:[#allocation2 + $0xb8] sm:$0xff]
    %v1105 = vld [vmem:[#allocation2 + $0xc0] sm:$0xff]
    %v1106 = vld [vmem:[#allocation2 + $0xc8] sm:$0xff]
    %v1107 = vld [vmem:[#allocation2 + $0xd0] sm:$0xff]
    %v1108 = vld [vmem:[#allocation2 + $0xd8] sm:$0xff]
    %v1109 = vld [vmem:[#allocation2 + $0xe0] sm:$0xff]
    %v1110 = vld [vmem:[#allocation2 + $0xe8] sm:$0xff]
    %v1111 = vld [vmem:[#allocation2 + $0xf0] sm:$0xff]
    %v1112 = vld [vmem:[#allocation2 + $0xf8] sm:$0xff]
    %v1113 = vmul.f32 %v1018, %v1081
    %v1114 = vmul.f32 %v1020, %v1082
    %v1115 = vmul.f32 %v1022, %v1083
    %v1116 = vmul.f32 %v1024, %v1084
    %v1117 = vmul.f32 %v1026, %v1085
    %v1118 = vmul.f32 %v1028, %v1086
    %v1119 = vmul.f32 %v1030, %v1087
    %v1120 = vmul.f32 %v1032, %v1088
    %v1121 = vmul.f32 %v1034, %v1089
    %v1122 = vmul.f32 %v1036, %v1090
    %v1123 = vmul.f32 %v1038, %v1091
    %v1124 = vmul.f32 %v1040, %v1092
    %v1125 = vmul.f32 %v1042, %v1093
    %v1126 = vmul.f32 %v1044, %v1094
    %v1127 = vmul.f32 %v1046, %v1095
    %v1128 = vmul.f32 %v1048, %v1096
    %v1129 = vmul.f32 %v1050, %v1097
    %v1130 = vmul.f32 %v1052, %v1098
    %v1131 = vmul.f32 %v1054, %v1099
    %v1132 = vmul.f32 %v1056, %v1100
    %v1133 = vmul.f32 %v1058, %v1101
    %v1134 = vmul.f32 %v1060, %v1102
    %v1135 = vmul.f32 %v1062, %v1103
    %v1136 = vmul.f32 %v1064, %v1104
    %v1137 = vmul.f32 %v1066, %v1105
    %v1138 = vmul.f32 %v1068, %v1106
    %v1139 = vmul.f32 %v1070, %v1107
    %v1140 = vmul.f32 %v1072, %v1108
    %v1141 = vmul.f32 %v1074, %v1109
    %v1142 = vmul.f32 %v1076, %v1110
    %v1143 = vmul.f32 %v1078, %v1111
    %v1144 = vmul.f32 %v1080, %v1112
    %v1145 = vadd.f32 %v763, %v1113
    %v1146 = vadd.f32 %v766, %v1114
    %v1147 = vadd.f32 %v771, %v1115
    %v1148 = vadd.f32 %v774, %v1116
    %v1149 = vadd.f32 %v779, %v1117
    %v1150 = vadd.f32 %v782, %v1118
    %v1151 = vadd.f32 %v787, %v1119
    %v1152 = vadd.f32 %v790, %v1120
    %v1153 = vadd.f32 %v795, %v1121
    %v1154 = vadd.f32 %v798, %v1122
    %v1155 = vadd.f32 %v803, %v1123
    %v1156 = vadd.f32 %v806, %v1124
    %v1157 = vadd.f32 %v811, %v1125
    %v1158 = vadd.f32 %v814, %v1126
    %v1159 = vadd.f32 %v819, %v1127
    %v1160 = vadd.f32 %v822, %v1128
    %v1161 = vadd.f32 %v827, %v1129
    %v1162 = vadd.f32 %v830, %v1130
    %v1163 = vadd.f32 %v835, %v1131
    %v1164 = vadd.f32 %v838, %v1132
    %v1165 = vadd.f32 %v843, %v1133
    %v1166 = vadd.f32 %v846, %v1134
    %v1167 = vadd.f32 %v851, %v1135
    %v1168 = vadd.f32 %v854, %v1136
    %v1169 = vadd.f32 %v859, %v1137
    %v1170 = vadd.f32 %v862, %v1138
    %v1171 = vadd.f32 %v867, %v1139
    %v1172 = vadd.f32 %v870, %v1140
    %v1173 = vadd.f32 %v875, %v1141
    %v1174 = vadd.f32 %v878, %v1142
    %v1175 = vadd.f32 %v883, %v1143
    %v1176 = vadd.f32 %v886, %v1144
    %v1177 = vpack.c.bf16 %v1146, %v1145
    %v1178 = vpack.c.bf16 %v1148, %v1147
    %v1179 = vpack.c.bf16 %v1150, %v1149
    %v1180 = vpack.c.bf16 %v1152, %v1151
    %v1181 = vpack.c.bf16 %v1154, %v1153
    %v1182 = vpack.c.bf16 %v1156, %v1155
    %v1183 = vpack.c.bf16 %v1158, %v1157
    %v1184 = vpack.c.bf16 %v1160, %v1159
    %v1185 = vpack.c.bf16 %v1162, %v1161
    %v1186 = vpack.c.bf16 %v1164, %v1163
    %v1187 = vpack.c.bf16 %v1166, %v1165
    %v1188 = vpack.c.bf16 %v1168, %v1167
    %v1189 = vpack.c.bf16 %v1170, %v1169
    %v1190 = vpack.c.bf16 %v1172, %v1171
    %v1191 = vpack.c.bf16 %v1174, %v1173
    %v1192 = vpack.c.bf16 %v1176, %v1175
    %s1193 = scalar_lea.vmem [#allocation5], 192
    %v1194 = vld [vmem:[%s1193] sm:$0xf]
    %v1195 = vld [vmem:[%s1193 + $0x4] sm:$0xf]
    %v1196 = vld [vmem:[%s1193 + $0x8] sm:$0xf]
    %v1197 = vld [vmem:[%s1193 + $0xc] sm:$0xf]
    %v1198 = vld [vmem:[%s1193 + $0x10] sm:$0xf]
    %v1199 = vld [vmem:[%s1193 + $0x14] sm:$0xf]
    %v1200 = vld [vmem:[%s1193 + $0x18] sm:$0xf]
    %v1201 = vld [vmem:[%s1193 + $0x1c] sm:$0xf]
    %v1202 = vld [vmem:[%s1193 + $0x20] sm:$0xf]
    %v1203 = vld [vmem:[%s1193 + $0x24] sm:$0xf]
    %v1204 = vld [vmem:[%s1193 + $0x28] sm:$0xf]
    %v1205 = vld [vmem:[%s1193 + $0x2c] sm:$0xf]
    %v1206 = vld [vmem:[%s1193 + $0x30] sm:$0xf]
    %v1207 = vld [vmem:[%s1193 + $0x34] sm:$0xf]
    %v1208 = vld [vmem:[%s1193 + $0x38] sm:$0xf]
    %v1209 = vld [vmem:[%s1193 + $0x3c] sm:$0xf]
    %v1210 = vlaneseq
    %v1211 = vshrl.u32 %v1210, 7
    %v1212 = vsub.s32 3, %v1211
    %v1213 = vrot.slane %v55, %v1212
    %v1230 = vunpack.c.l.b16 %v1194
    %v1231 = vunpack.c.l.b16 %v1195
    %v1232 = vunpack.c.l.b16 %v1196
    %v1233 = vunpack.c.l.b16 %v1197
    %v1234 = vunpack.c.l.b16 %v1198
    %v1235 = vunpack.c.l.b16 %v1199
    %v1236 = vunpack.c.l.b16 %v1200
    %v1237 = vunpack.c.l.b16 %v1201
    %v1238 = vunpack.c.l.b16 %v1202
    %v1239 = vunpack.c.l.b16 %v1203
    %v1240 = vunpack.c.l.b16 %v1204
    %v1241 = vunpack.c.l.b16 %v1205
    %v1242 = vunpack.c.l.b16 %v1206
    %v1243 = vunpack.c.l.b16 %v1207
    %v1244 = vunpack.c.l.b16 %v1208
    %v1245 = vunpack.c.l.b16 %v1209
    %v1246 = vpack.c.b16 %v1231, %v1230
    %v1247 = vpack.c.b16 %v1233, %v1232
    %v1248 = vpack.c.b16 %v1235, %v1234
    %v1249 = vpack.c.b16 %v1237, %v1236
    %v1250 = vpack.c.b16 %v1239, %v1238
    %v1251 = vpack.c.b16 %v1241, %v1240
    %v1252 = vpack.c.b16 %v1243, %v1242
    %v1253 = vpack.c.b16 %v1245, %v1244
    %1262 = vmatprep.subr.bf16.mxu0 0
    %1263 = vmatpush1.bf16.msra.mxu0 %v1246
    %1264 = vmatprep.subr.bf16.mxu0 0
    %1265 = vmatpush1.bf16.msra.mxu0 %v1247
    %1266 = vmatprep.subr.bf16.mxu0 0
    %1267 = vmatpush1.bf16.msra.mxu0 %v1248
    %1268 = vmatprep.subr.bf16.mxu0 0
    %1269 = vmatpush1.bf16.msra.mxu0 %v1249
    %1270 = vmatprep.subr.bf16.mxu0 0
    %1271 = vmatpush1.bf16.msra.mxu0 %v1250
    %1272 = vmatprep.subr.bf16.mxu0 0
    %1273 = vmatpush1.bf16.msra.mxu0 %v1251
    %1274 = vmatprep.subr.bf16.mxu0 0
    %1275 = vmatpush1.bf16.msra.mxu0 %v1252
    %1276 = vmatprep.subr.bf16.mxu0 0
    %1277 = vmatpush1.bf16.msra.mxu0 %v1253
    %1278 = vmatprep.subr.bf16.mxu0 0
    %1279 = vmatpush1.bf16.msra.mxu0 0
    %1280 = vmatprep.subr.bf16.mxu0 0
    %1281 = vmatpush1.bf16.msra.mxu0 0
    %1282 = vmatprep.subr.bf16.mxu0 0
    %1283 = vmatpush1.bf16.msra.mxu0 0
    %1284 = vmatprep.subr.bf16.mxu0 0
    %1285 = vmatpush1.bf16.msra.mxu0 0
    %1286 = vmatprep.subr.bf16.mxu0 0
    %1287 = vmatpush1.bf16.msra.mxu0 0
    %1288 = vmatprep.subr.bf16.mxu0 0
    %1289 = vmatpush1.bf16.msra.mxu0 0
    %1290 = vmatprep.subr.bf16.mxu0 0
    %1291 = vmatpush1.bf16.msra.mxu0 0
    %1292 = vmatprep.subr.bf16.mxu0 0
    %1293 = vmatpush1.bf16.msra.mxu0 0
    %1294 = vmatprep.mubr.bf16.mxu0 0
    %1295 = vmatmul.mubr.bf16.gmra.mrb[0].mxu0 %v1177
    %v1296 = vpop.f32.mrb[0].mxu0
    %v1297 = vadd.f32 %v1213, %v1296
    %v1298 = vpop.f32.mrb[0].mxu0
    %v1299 = vpop.f32.mrb[0].mxu0
    %v1300 = vadd.f32 %v1213, %v1299
    %v1301 = vpop.f32.mrb[0].mxu0
    %1302 = vmatprep.mubr.bf16.mxu0 0
    %1303 = vmatmul.mubr.bf16.gmra.mrb[0].mxu0 %v1178
    %v1304 = vpop.f32.mrb[0].mxu0
    %v1305 = vadd.f32 %v1213, %v1304
    %v1306 = vpop.f32.mrb[0].mxu0
    %v1307 = vpop.f32.mrb[0].mxu0
    %v1308 = vadd.f32 %v1213, %v1307
    %v1309 = vpop.f32.mrb[0].mxu0
    %1310 = vmatprep.mubr.bf16.mxu0 0
    %1311 = vmatmul.mubr.bf16.gmra.mrb[0].mxu0 %v1179
    %v1312 = vpop.f32.mrb[0].mxu0
    %v1313 = vadd.f32 %v1213, %v1312
    %v1314 = vpop.f32.mrb[0].mxu0
    %v1315 = vpop.f32.mrb[0].mxu0
    %v1316 = vadd.f32 %v1213, %v1315
    %v1317 = vpop.f32.mrb[0].mxu0
    %1318 = vmatprep.mubr.bf16.mxu0 0
    %1319 = vmatmul.mubr.bf16.gmra.mrb[0].mxu0 %v1180
    %v1320 = vpop.f32.mrb[0].mxu0
    %v1321 = vadd.f32 %v1213, %v1320
    %v1322 = vpop.f32.mrb[0].mxu0
    %v1323 = vpop.f32.mrb[0].mxu0
    %v1324 = vadd.f32 %v1213, %v1323
    %v1325 = vpop.f32.mrb[0].mxu0
    %1326 = vmatprep.mubr.bf16.mxu0 0
    %1327 = vmatmul.mubr.bf16.gmra.mrb[0].mxu0 %v1181
    %v1328 = vpop.f32.mrb[0].mxu0
    %v1329 = vadd.f32 %v1213, %v1328
    %v1330 = vpop.f32.mrb[0].mxu0
    %v1331 = vpop.f32.mrb[0].mxu0
    %v1332 = vadd.f32 %v1213, %v1331
    %v1333 = vpop.f32.mrb[0].mxu0
    %1334 = vmatprep.mubr.bf16.mxu0 0
    %1335 = vmatmul.mubr.bf16.gmra.mrb[0].mxu0 %v1182
    %v1336 = vpop.f32.mrb[0].mxu0
    %v1337 = vadd.f32 %v1213, %v1336
    %v1338 = vpop.f32.mrb[0].mxu0
    %v1339 = vpop.f32.mrb[0].mxu0
    %v1340 = vadd.f32 %v1213, %v1339
    %v1341 = vpop.f32.mrb[0].mxu0
    %1342 = vmatprep.mubr.bf16.mxu0 0
    %1343 = vmatmul.mubr.bf16.gmra.mrb[0].mxu0 %v1183
    %v1344 = vpop.f32.mrb[0].mxu0
    %v1345 = vadd.f32 %v1213, %v1344
    %v1346 = vpop.f32.mrb[0].mxu0
    %v1347 = vpop.f32.mrb[0].mxu0
    %v1348 = vadd.f32 %v1213, %v1347
    %v1349 = vpop.f32.mrb[0].mxu0
    %1350 = vmatprep.mubr.bf16.mxu0 0
    %1351 = vmatmul.mubr.bf16.gmra.mrb[0].mxu0 %v1184
    %v1352 = vpop.f32.mrb[0].mxu0
    %v1353 = vadd.f32 %v1213, %v1352
    %v1354 = vpop.f32.mrb[0].mxu0
    %v1355 = vpop.f32.mrb[0].mxu0
    %v1356 = vadd.f32 %v1213, %v1355
    %v1357 = vpop.f32.mrb[0].mxu0
    %1358 = vmatprep.mubr.bf16.mxu0 0
    %1359 = vmatmul.mubr.bf16.gmra.mrb[0].mxu0 %v1185
    %v1360 = vpop.f32.mrb[0].mxu0
    %v1361 = vadd.f32 %v1213, %v1360
    %v1362 = vpop.f32.mrb[0].mxu0
    %v1363 = vpop.f32.mrb[0].mxu0
    %v1364 = vadd.f32 %v1213, %v1363
    %v1365 = vpop.f32.mrb[0].mxu0
    %1366 = vmatprep.mubr.bf16.mxu0 0
    %1367 = vmatmul.mubr.bf16.gmra.mrb[0].mxu0 %v1186
    %v1368 = vpop.f32.mrb[0].mxu0
    %v1369 = vadd.f32 %v1213, %v1368
    %v1370 = vpop.f32.mrb[0].mxu0
    %v1371 = vpop.f32.mrb[0].mxu0
    %v1372 = vadd.f32 %v1213, %v1371
    %v1373 = vpop.f32.mrb[0].mxu0
    %1374 = vmatprep.mubr.bf16.mxu0 0
    %1375 = vmatmul.mubr.bf16.gmra.mrb[0].mxu0 %v1187
    %v1376 = vpop.f32.mrb[0].mxu0
    %v1377 = vadd.f32 %v1213, %v1376
    %v1378 = vpop.f32.mrb[0].mxu0
    %v1379 = vpop.f32.mrb[0].mxu0
    %v1380 = vadd.f32 %v1213, %v1379
    %v1381 = vpop.f32.mrb[0].mxu0
    %1382 = vmatprep.mubr.bf16.mxu0 0
    %1383 = vmatmul.mubr.bf16.gmra.mrb[0].mxu0 %v1188
    %v1384 = vpop.f32.mrb[0].mxu0
    %v1385 = vadd.f32 %v1213, %v1384
    %v1386 = vpop.f32.mrb[0].mxu0
    %v1387 = vpop.f32.mrb[0].mxu0
    %v1388 = vadd.f32 %v1213, %v1387
    %v1389 = vpop.f32.mrb[0].mxu0
    %1390 = vmatprep.mubr.bf16.mxu0 0
    %1391 = vmatmul.mubr.bf16.gmra.mrb[0].mxu0 %v1189
    %v1392 = vpop.f32.mrb[0].mxu0
    %v1393 = vadd.f32 %v1213, %v1392
    %v1394 = vpop.f32.mrb[0].mxu0
    %v1395 = vpop.f32.mrb[0].mxu0
    %v1396 = vadd.f32 %v1213, %v1395
    %v1397 = vpop.f32.mrb[0].mxu0
    %1398 = vmatprep.mubr.bf16.mxu0 0
    %1399 = vmatmul.mubr.bf16.gmra.mrb[0].mxu0 %v1190
    %v1400 = vpop.f32.mrb[0].mxu0
    %v1401 = vadd.f32 %v1213, %v1400
    %v1402 = vpop.f32.mrb[0].mxu0
    %v1403 = vpop.f32.mrb[0].mxu0
    %v1404 = vadd.f32 %v1213, %v1403
    %v1405 = vpop.f32.mrb[0].mxu0
    %1406 = vmatprep.mubr.bf16.mxu0 0
    %1407 = vmatmul.mubr.bf16.gmra.mrb[0].mxu0 %v1191
    %v1408 = vpop.f32.mrb[0].mxu0
    %v1409 = vadd.f32 %v1213, %v1408
    %v1410 = vpop.f32.mrb[0].mxu0
    %v1411 = vpop.f32.mrb[0].mxu0
    %v1412 = vadd.f32 %v1213, %v1411
    %v1413 = vpop.f32.mrb[0].mxu0
    %1414 = vmatprep.mubr.bf16.mxu0 0
    %1415 = vmatmul.mubr.bf16.gmra.mrb[0].mxu0 %v1192
    %v1416 = vpop.f32.mrb[0].mxu0
    %v1417 = vadd.f32 %v1213, %v1416
    %v1418 = vpop.f32.mrb[0].mxu0
    %v1419 = vpop.f32.mrb[0].mxu0
    %v1420 = vadd.f32 %v1213, %v1419
    %v1421 = vpop.f32.mrb[0].mxu0
    %1422 = vdwg.mxu0
    %v1423 = vmax.f32 %v1297, 0.0
    %v1424 = vmax.f32 %v1300, 0.0
    %v1425 = vmax.f32 %v1305, 0.0
    %v1426 = vmax.f32 %v1308, 0.0
    %v1427 = vmax.f32 %v1313, 0.0
    %v1428 = vmax.f32 %v1316, 0.0
    %v1429 = vmax.f32 %v1321, 0.0
    %v1430 = vmax.f32 %v1324, 0.0
    %v1431 = vmax.f32 %v1329, 0.0
    %v1432 = vmax.f32 %v1332, 0.0
    %v1433 = vmax.f32 %v1337, 0.0
    %v1434 = vmax.f32 %v1340, 0.0
    %v1435 = vmax.f32 %v1345, 0.0
    %v1436 = vmax.f32 %v1348, 0.0
    %v1437 = vmax.f32 %v1353, 0.0
    %v1438 = vmax.f32 %v1356, 0.0
    %v1439 = vmax.f32 %v1361, 0.0
    %v1440 = vmax.f32 %v1364, 0.0
    %v1441 = vmax.f32 %v1369, 0.0
    %v1442 = vmax.f32 %v1372, 0.0
    %v1443 = vmax.f32 %v1377, 0.0
    %v1444 = vmax.f32 %v1380, 0.0
    %v1445 = vmax.f32 %v1385, 0.0
    %v1446 = vmax.f32 %v1388, 0.0
    %v1447 = vmax.f32 %v1393, 0.0
    %v1448 = vmax.f32 %v1396, 0.0
    %v1449 = vmax.f32 %v1401, 0.0
    %v1450 = vmax.f32 %v1404, 0.0
    %v1451 = vmax.f32 %v1409, 0.0
    %v1452 = vmax.f32 %v1412, 0.0
    %v1453 = vmax.f32 %v1417, 0.0
    %v1454 = vmax.f32 %v1420, 0.0
    %v1455 = vpack.c.bf16 %v1424, %v1423
    %v1456 = vpack.c.bf16 %v1426, %v1425
    %v1457 = vpack.c.bf16 %v1428, %v1427
    %v1458 = vpack.c.bf16 %v1430, %v1429
    %v1459 = vpack.c.bf16 %v1432, %v1431
    %v1460 = vpack.c.bf16 %v1434, %v1433
    %v1461 = vpack.c.bf16 %v1436, %v1435
    %v1462 = vpack.c.bf16 %v1438, %v1437
    %v1463 = vpack.c.bf16 %v1440, %v1439
    %v1464 = vpack.c.bf16 %v1442, %v1441
    %v1465 = vpack.c.bf16 %v1444, %v1443
    %v1466 = vpack.c.bf16 %v1446, %v1445
    %v1467 = vpack.c.bf16 %v1448, %v1447
    %v1468 = vpack.c.bf16 %v1450, %v1449
    %v1469 = vpack.c.bf16 %v1452, %v1451
    %v1470 = vpack.c.bf16 %v1454, %v1453
    %s1471 = scalar_lea.vmem [#allocation5], 256
    %v1472 = vld [vmem:[%s1471] sm:$0xf]
    %v1473 = vld [vmem:[%s1471 + $0x4] sm:$0xf]
    %v1474 = vld [vmem:[%s1471 + $0x8] sm:$0xf]
    %v1475 = vld [vmem:[%s1471 + $0xc] sm:$0xf]
    %v1476 = vld [vmem:[%s1471 + $0x10] sm:$0xf]
    %v1477 = vld [vmem:[%s1471 + $0x14] sm:$0xf]
    %v1478 = vld [vmem:[%s1471 + $0x18] sm:$0xf]
    %v1479 = vld [vmem:[%s1471 + $0x1c] sm:$0xf]
    %v1480 = vld [vmem:[%s1471 + $0x20] sm:$0xf]
    %v1481 = vld [vmem:[%s1471 + $0x24] sm:$0xf]
    %v1482 = vld [vmem:[%s1471 + $0x28] sm:$0xf]
    %v1483 = vld [vmem:[%s1471 + $0x2c] sm:$0xf]
    %v1484 = vld [vmem:[%s1471 + $0x30] sm:$0xf]
    %v1485 = vld [vmem:[%s1471 + $0x34] sm:$0xf]
    %v1486 = vld [vmem:[%s1471 + $0x38] sm:$0xf]
    %v1487 = vld [vmem:[%s1471 + $0x3c] sm:$0xf]
    %v1488 = vlaneseq
    %v1489 = vshrl.u32 %v1488, 7
    %v1490 = vsub.s32 4, %v1489
    %v1491 = vrot.slane %v55, %v1490
    %v1508 = vunpack.c.l.b16 %v1472
    %v1509 = vunpack.c.l.b16 %v1473
    %v1510 = vunpack.c.l.b16 %v1474
    %v1511 = vunpack.c.l.b16 %v1475
    %v1512 = vunpack.c.l.b16 %v1476
    %v1513 = vunpack.c.l.b16 %v1477
    %v1514 = vunpack.c.l.b16 %v1478
    %v1515 = vunpack.c.l.b16 %v1479
    %v1516 = vunpack.c.l.b16 %v1480
    %v1517 = vunpack.c.l.b16 %v1481
    %v1518 = vunpack.c.l.b16 %v1482
    %v1519 = vunpack.c.l.b16 %v1483
    %v1520 = vunpack.c.l.b16 %v1484
    %v1521 = vunpack.c.l.b16 %v1485
    %v1522 = vunpack.c.l.b16 %v1486
    %v1523 = vunpack.c.l.b16 %v1487
    %v1524 = vpack.c.b16 %v1509, %v1508
    %v1525 = vpack.c.b16 %v1511, %v1510
    %v1526 = vpack.c.b16 %v1513, %v1512
    %v1527 = vpack.c.b16 %v1515, %v1514
    %v1528 = vpack.c.b16 %v1517, %v1516
    %v1529 = vpack.c.b16 %v1519, %v1518
    %v1530 = vpack.c.b16 %v1521, %v1520
    %v1531 = vpack.c.b16 %v1523, %v1522
    %1540 = vmatprep.subr.bf16.mxu0 0
    %1541 = vmatpush1.bf16.msra.mxu0 %v1524
    %1542 = vmatprep.subr.bf16.mxu0 0
    %1543 = vmatpush1.bf16.msra.mxu0 %v1525
    %1544 = vmatprep.subr.bf16.mxu0 0
    %1545 = vmatpush1.bf16.msra.mxu0 %v1526
    %1546 = vmatprep.subr.bf16.mxu0 0
    %1547 = vmatpush1.bf16.msra.mxu0 %v1527
    %1548 = vmatprep.subr.bf16.mxu0 0
    %1549 = vmatpush1.bf16.msra.mxu0 %v1528
    %1550 = vmatprep.subr.bf16.mxu0 0
    %1551 = vmatpush1.bf16.msra.mxu0 %v1529
    %1552 = vmatprep.subr.bf16.mxu0 0
    %1553 = vmatpush1.bf16.msra.mxu0 %v1530
    %1554 = vmatprep.subr.bf16.mxu0 0
    %1555 = vmatpush1.bf16.msra.mxu0 %v1531
    %1556 = vmatprep.subr.bf16.mxu0 0
    %1557 = vmatpush1.bf16.msra.mxu0 0
    %1558 = vmatprep.subr.bf16.mxu0 0
    %1559 = vmatpush1.bf16.msra.mxu0 0
    %1560 = vmatprep.subr.bf16.mxu0 0
    %1561 = vmatpush1.bf16.msra.mxu0 0
    %1562 = vmatprep.subr.bf16.mxu0 0
    %1563 = vmatpush1.bf16.msra.mxu0 0
    %1564 = vmatprep.subr.bf16.mxu0 0
    %1565 = vmatpush1.bf16.msra.mxu0 0
    %1566 = vmatprep.subr.bf16.mxu0 0
    %1567 = vmatpush1.bf16.msra.mxu0 0
    %1568 = vmatprep.subr.bf16.mxu0 0
    %1569 = vmatpush1.bf16.msra.mxu0 0
    %1570 = vmatprep.subr.bf16.mxu0 0
    %1571 = vmatpush1.bf16.msra.mxu0 0
    %1572 = vmatprep.mubr.bf16.mxu0 0
    %1573 = vmatmul.mubr.bf16.gmra.mrb[0].mxu0 %v1455
    %v1574 = vpop.f32.mrb[0].mxu0
    %v1575 = vadd.f32 %v1491, %v1574
    %v1576 = vpop.f32.mrb[0].mxu0
    %v1577 = vpop.f32.mrb[0].mxu0
    %v1578 = vadd.f32 %v1491, %v1577
    %v1579 = vpop.f32.mrb[0].mxu0
    %1580 = vmatprep.mubr.bf16.mxu0 0
    %1581 = vmatmul.mubr.bf16.gmra.mrb[0].mxu0 %v1456
    %v1582 = vpop.f32.mrb[0].mxu0
    %v1583 = vadd.f32 %v1491, %v1582
    %v1584 = vpop.f32.mrb[0].mxu0
    %v1585 = vpop.f32.mrb[0].mxu0
    %v1586 = vadd.f32 %v1491, %v1585
    %v1587 = vpop.f32.mrb[0].mxu0
    %1588 = vmatprep.mubr.bf16.mxu0 0
    %1589 = vmatmul.mubr.bf16.gmra.mrb[0].mxu0 %v1457
    %v1590 = vpop.f32.mrb[0].mxu0
    %v1591 = vadd.f32 %v1491, %v1590
    %v1592 = vpop.f32.mrb[0].mxu0
    %v1593 = vpop.f32.mrb[0].mxu0
    %v1594 = vadd.f32 %v1491, %v1593
    %v1595 = vpop.f32.mrb[0].mxu0
    %1596 = vmatprep.mubr.bf16.mxu0 0
    %1597 = vmatmul.mubr.bf16.gmra.mrb[0].mxu0 %v1458
    %v1598 = vpop.f32.mrb[0].mxu0
    %v1599 = vadd.f32 %v1491, %v1598
    %v1600 = vpop.f32.mrb[0].mxu0
    %v1601 = vpop.f32.mrb[0].mxu0
    %v1602 = vadd.f32 %v1491, %v1601
    %v1603 = vpop.f32.mrb[0].mxu0
    %1604 = vmatprep.mubr.bf16.mxu0 0
    %1605 = vmatmul.mubr.bf16.gmra.mrb[0].mxu0 %v1459
    %v1606 = vpop.f32.mrb[0].mxu0
    %v1607 = vadd.f32 %v1491, %v1606
    %v1608 = vpop.f32.mrb[0].mxu0
    %v1609 = vpop.f32.mrb[0].mxu0
    %v1610 = vadd.f32 %v1491, %v1609
    %v1611 = vpop.f32.mrb[0].mxu0
    %1612 = vmatprep.mubr.bf16.mxu0 0
    %1613 = vmatmul.mubr.bf16.gmra.mrb[0].mxu0 %v1460
    %v1614 = vpop.f32.mrb[0].mxu0
    %v1615 = vadd.f32 %v1491, %v1614
    %v1616 = vpop.f32.mrb[0].mxu0
    %v1617 = vpop.f32.mrb[0].mxu0
    %v1618 = vadd.f32 %v1491, %v1617
    %v1619 = vpop.f32.mrb[0].mxu0
    %1620 = vmatprep.mubr.bf16.mxu0 0
    %1621 = vmatmul.mubr.bf16.gmra.mrb[0].mxu0 %v1461
    %v1622 = vpop.f32.mrb[0].mxu0
    %v1623 = vadd.f32 %v1491, %v1622
    %v1624 = vpop.f32.mrb[0].mxu0
    %v1625 = vpop.f32.mrb[0].mxu0
    %v1626 = vadd.f32 %v1491, %v1625
    %v1627 = vpop.f32.mrb[0].mxu0
    %1628 = vmatprep.mubr.bf16.mxu0 0
    %1629 = vmatmul.mubr.bf16.gmra.mrb[0].mxu0 %v1462
    %v1630 = vpop.f32.mrb[0].mxu0
    %v1631 = vadd.f32 %v1491, %v1630
    %v1632 = vpop.f32.mrb[0].mxu0
    %v1633 = vpop.f32.mrb[0].mxu0
    %v1634 = vadd.f32 %v1491, %v1633
    %v1635 = vpop.f32.mrb[0].mxu0
    %1636 = vmatprep.mubr.bf16.mxu0 0
    %1637 = vmatmul.mubr.bf16.gmra.mrb[0].mxu0 %v1463
    %v1638 = vpop.f32.mrb[0].mxu0
    %v1639 = vadd.f32 %v1491, %v1638
    %v1640 = vpop.f32.mrb[0].mxu0
    %v1641 = vpop.f32.mrb[0].mxu0
    %v1642 = vadd.f32 %v1491, %v1641
    %v1643 = vpop.f32.mrb[0].mxu0
    %1644 = vmatprep.mubr.bf16.mxu0 0
    %1645 = vmatmul.mubr.bf16.gmra.mrb[0].mxu0 %v1464
    %v1646 = vpop.f32.mrb[0].mxu0
    %v1647 = vadd.f32 %v1491, %v1646
    %v1648 = vpop.f32.mrb[0].mxu0
    %v1649 = vpop.f32.mrb[0].mxu0
    %v1650 = vadd.f32 %v1491, %v1649
    %v1651 = vpop.f32.mrb[0].mxu0
    %1652 = vmatprep.mubr.bf16.mxu0 0
    %1653 = vmatmul.mubr.bf16.gmra.mrb[0].mxu0 %v1465
    %v1654 = vpop.f32.mrb[0].mxu0
    %v1655 = vadd.f32 %v1491, %v1654
    %v1656 = vpop.f32.mrb[0].mxu0
    %v1657 = vpop.f32.mrb[0].mxu0
    %v1658 = vadd.f32 %v1491, %v1657
    %v1659 = vpop.f32.mrb[0].mxu0
    %1660 = vmatprep.mubr.bf16.mxu0 0
    %1661 = vmatmul.mubr.bf16.gmra.mrb[0].mxu0 %v1466
    %v1662 = vpop.f32.mrb[0].mxu0
    %v1663 = vadd.f32 %v1491, %v1662
    %v1664 = vpop.f32.mrb[0].mxu0
    %v1665 = vpop.f32.mrb[0].mxu0
    %v1666 = vadd.f32 %v1491, %v1665
    %v1667 = vpop.f32.mrb[0].mxu0
    %1668 = vmatprep.mubr.bf16.mxu0 0
    %1669 = vmatmul.mubr.bf16.gmra.mrb[0].mxu0 %v1467
    %v1670 = vpop.f32.mrb[0].mxu0
    %v1671 = vadd.f32 %v1491, %v1670
    %v1672 = vpop.f32.mrb[0].mxu0
    %v1673 = vpop.f32.mrb[0].mxu0
    %v1674 = vadd.f32 %v1491, %v1673
    %v1675 = vpop.f32.mrb[0].mxu0
    %1676 = vmatprep.mubr.bf16.mxu0 0
    %1677 = vmatmul.mubr.bf16.gmra.mrb[0].mxu0 %v1468
    %v1678 = vpop.f32.mrb[0].mxu0
    %v1679 = vadd.f32 %v1491, %v1678
    %v1680 = vpop.f32.mrb[0].mxu0
    %v1681 = vpop.f32.mrb[0].mxu0
    %v1682 = vadd.f32 %v1491, %v1681
    %v1683 = vpop.f32.mrb[0].mxu0
    %1684 = vmatprep.mubr.bf16.mxu0 0
    %1685 = vmatmul.mubr.bf16.gmra.mrb[0].mxu0 %v1469
    %v1686 = vpop.f32.mrb[0].mxu0
    %v1687 = vadd.f32 %v1491, %v1686
    %v1688 = vpop.f32.mrb[0].mxu0
    %v1689 = vpop.f32.mrb[0].mxu0
    %v1690 = vadd.f32 %v1491, %v1689
    %v1691 = vpop.f32.mrb[0].mxu0
    %1692 = vmatprep.mubr.bf16.mxu0 0
    %1693 = vmatmul.mubr.bf16.gmra.mrb[0].mxu0 %v1470
    %v1694 = vpop.f32.mrb[0].mxu0
    %v1695 = vadd.f32 %v1491, %v1694
    %v1696 = vpop.f32.mrb[0].mxu0
    %v1697 = vpop.f32.mrb[0].mxu0
    %v1698 = vadd.f32 %v1491, %v1697
    %v1699 = vpop.f32.mrb[0].mxu0
    %1700 = vdwg.mxu0
    %v1701 = vmax.f32 %v1575, 0.0
    %v1702 = vmax.f32 %v1578, 0.0
    %v1703 = vmax.f32 %v1583, 0.0
    %v1704 = vmax.f32 %v1586, 0.0
    %v1705 = vmax.f32 %v1591, 0.0
    %v1706 = vmax.f32 %v1594, 0.0
    %v1707 = vmax.f32 %v1599, 0.0
    %v1708 = vmax.f32 %v1602, 0.0
    %v1709 = vmax.f32 %v1607, 0.0
    %v1710 = vmax.f32 %v1610, 0.0
    %v1711 = vmax.f32 %v1615, 0.0
    %v1712 = vmax.f32 %v1618, 0.0
    %v1713 = vmax.f32 %v1623, 0.0
    %v1714 = vmax.f32 %v1626, 0.0
    %v1715 = vmax.f32 %v1631, 0.0
    %v1716 = vmax.f32 %v1634, 0.0
    %v1717 = vmax.f32 %v1639, 0.0
    %v1718 = vmax.f32 %v1642, 0.0
    %v1719 = vmax.f32 %v1647, 0.0
    %v1720 = vmax.f32 %v1650, 0.0
    %v1721 = vmax.f32 %v1655, 0.0
    %v1722 = vmax.f32 %v1658, 0.0
    %v1723 = vmax.f32 %v1663, 0.0
    %v1724 = vmax.f32 %v1666, 0.0
    %v1725 = vmax.f32 %v1671, 0.0
    %v1726 = vmax.f32 %v1674, 0.0
    %v1727 = vmax.f32 %v1679, 0.0
    %v1728 = vmax.f32 %v1682, 0.0
    %v1729 = vmax.f32 %v1687, 0.0
    %v1730 = vmax.f32 %v1690, 0.0
    %v1731 = vmax.f32 %v1695, 0.0
    %v1732 = vmax.f32 %v1698, 0.0
    %v1733 = vpack.c.bf16 %v1702, %v1701
    %v1734 = vpack.c.bf16 %v1704, %v1703
    %v1735 = vpack.c.bf16 %v1706, %v1705
    %v1736 = vpack.c.bf16 %v1708, %v1707
    %v1737 = vpack.c.bf16 %v1710, %v1709
    %v1738 = vpack.c.bf16 %v1712, %v1711
    %v1739 = vpack.c.bf16 %v1714, %v1713
    %v1740 = vpack.c.bf16 %v1716, %v1715
    %v1741 = vpack.c.bf16 %v1718, %v1717
    %v1742 = vpack.c.bf16 %v1720, %v1719
    %v1743 = vpack.c.bf16 %v1722, %v1721
    %v1744 = vpack.c.bf16 %v1724, %v1723
    %v1745 = vpack.c.bf16 %v1726, %v1725
    %v1746 = vpack.c.bf16 %v1728, %v1727
    %v1747 = vpack.c.bf16 %v1730, %v1729
    %v1748 = vpack.c.bf16 %v1732, %v1731
    %s1749 = scalar_lea.vmem [#allocation5], 320
    %v1750 = vld [vmem:[%s1749] sm:$0xf]
    %v1751 = vld [vmem:[%s1749 + $0x4] sm:$0xf]
    %v1752 = vld [vmem:[%s1749 + $0x8] sm:$0xf]
    %v1753 = vld [vmem:[%s1749 + $0xc] sm:$0xf]
    %v1754 = vld [vmem:[%s1749 + $0x10] sm:$0xf]
    %v1755 = vld [vmem:[%s1749 + $0x14] sm:$0xf]
    %v1756 = vld [vmem:[%s1749 + $0x18] sm:$0xf]
    %v1757 = vld [vmem:[%s1749 + $0x1c] sm:$0xf]
    %v1758 = vld [vmem:[%s1749 + $0x20] sm:$0xf]
    %v1759 = vld [vmem:[%s1749 + $0x24] sm:$0xf]
    %v1760 = vld [vmem:[%s1749 + $0x28] sm:$0xf]
    %v1761 = vld [vmem:[%s1749 + $0x2c] sm:$0xf]
    %v1762 = vld [vmem:[%s1749 + $0x30] sm:$0xf]
    %v1763 = vld [vmem:[%s1749 + $0x34] sm:$0xf]
    %v1764 = vld [vmem:[%s1749 + $0x38] sm:$0xf]
    %v1765 = vld [vmem:[%s1749 + $0x3c] sm:$0xf]
    %v1766 = vlaneseq
    %v1767 = vshrl.u32 %v1766, 7
    %v1768 = vsub.s32 5, %v1767
    %v1769 = vrot.slane %v55, %v1768
    %v1786 = vunpack.c.l.b16 %v1750
    %v1787 = vunpack.c.l.b16 %v1751
    %v1788 = vunpack.c.l.b16 %v1752
    %v1789 = vunpack.c.l.b16 %v1753
    %v1790 = vunpack.c.l.b16 %v1754
    %v1791 = vunpack.c.l.b16 %v1755
    %v1792 = vunpack.c.l.b16 %v1756
    %v1793 = vunpack.c.l.b16 %v1757
    %v1794 = vunpack.c.l.b16 %v1758
    %v1795 = vunpack.c.l.b16 %v1759
    %v1796 = vunpack.c.l.b16 %v1760
    %v1797 = vunpack.c.l.b16 %v1761
    %v1798 = vunpack.c.l.b16 %v1762
    %v1799 = vunpack.c.l.b16 %v1763
    %v1800 = vunpack.c.l.b16 %v1764
    %v1801 = vunpack.c.l.b16 %v1765
    %v1802 = vpack.c.b16 %v1787, %v1786
    %v1803 = vpack.c.b16 %v1789, %v1788
    %v1804 = vpack.c.b16 %v1791, %v1790
    %v1805 = vpack.c.b16 %v1793, %v1792
    %v1806 = vpack.c.b16 %v1795, %v1794
    %v1807 = vpack.c.b16 %v1797, %v1796
    %v1808 = vpack.c.b16 %v1799, %v1798
    %v1809 = vpack.c.b16 %v1801, %v1800
    %1818 = vmatprep.subr.bf16.mxu0 0
    %1819 = vmatpush1.bf16.msra.mxu0 %v1802
    %1820 = vmatprep.subr.bf16.mxu0 0
    %1821 = vmatpush1.bf16.msra.mxu0 %v1803
    %1822 = vmatprep.subr.bf16.mxu0 0
    %1823 = vmatpush1.bf16.msra.mxu0 %v1804
    %1824 = vmatprep.subr.bf16.mxu0 0
    %1825 = vmatpush1.bf16.msra.mxu0 %v1805
    %1826 = vmatprep.subr.bf16.mxu0 0
    %1827 = vmatpush1.bf16.msra.mxu0 %v1806
    %1828 = vmatprep.subr.bf16.mxu0 0
    %1829 = vmatpush1.bf16.msra.mxu0 %v1807
    %1830 = vmatprep.subr.bf16.mxu0 0
    %1831 = vmatpush1.bf16.msra.mxu0 %v1808
    %1832 = vmatprep.subr.bf16.mxu0 0
    %1833 = vmatpush1.bf16.msra.mxu0 %v1809
    %1834 = vmatprep.subr.bf16.mxu0 0
    %1835 = vmatpush1.bf16.msra.mxu0 0
    %1836 = vmatprep.subr.bf16.mxu0 0
    %1837 = vmatpush1.bf16.msra.mxu0 0
    %1838 = vmatprep.subr.bf16.mxu0 0
    %1839 = vmatpush1.bf16.msra.mxu0 0
    %1840 = vmatprep.subr.bf16.mxu0 0
    %1841 = vmatpush1.bf16.msra.mxu0 0
    %1842 = vmatprep.subr.bf16.mxu0 0
    %1843 = vmatpush1.bf16.msra.mxu0 0
    %1844 = vmatprep.subr.bf16.mxu0 0
    %1845 = vmatpush1.bf16.msra.mxu0 0
    %1846 = vmatprep.subr.bf16.mxu0 0
    %1847 = vmatpush1.bf16.msra.mxu0 0
    %1848 = vmatprep.subr.bf16.mxu0 0
    %1849 = vmatpush1.bf16.msra.mxu0 0
    %1850 = vmatprep.mubr.bf16.mxu0 0
    %1851 = vmatmul.mubr.bf16.gmra.mrb[0].mxu0 %v1733
    %v1852 = vpop.f32.mrb[0].mxu0
    %v1853 = vadd.f32 %v1769, %v1852
    %v1854 = vpop.f32.mrb[0].mxu0
    %v1855 = vpop.f32.mrb[0].mxu0
    %v1856 = vadd.f32 %v1769, %v1855
    %v1857 = vpop.f32.mrb[0].mxu0
    %1858 = vmatprep.mubr.bf16.mxu0 0
    %1859 = vmatmul.mubr.bf16.gmra.mrb[0].mxu0 %v1734
    %v1860 = vpop.f32.mrb[0].mxu0
    %v1861 = vadd.f32 %v1769, %v1860
    %v1862 = vpop.f32.mrb[0].mxu0
    %v1863 = vpop.f32.mrb[0].mxu0
    %v1864 = vadd.f32 %v1769, %v1863
    %v1865 = vpop.f32.mrb[0].mxu0
    %1866 = vmatprep.mubr.bf16.mxu0 0
    %1867 = vmatmul.mubr.bf16.gmra.mrb[0].mxu0 %v1735
    %v1868 = vpop.f32.mrb[0].mxu0
    %v1869 = vadd.f32 %v1769, %v1868
    %v1870 = vpop.f32.mrb[0].mxu0
    %v1871 = vpop.f32.mrb[0].mxu0
    %v1872 = vadd.f32 %v1769, %v1871
    %v1873 = vpop.f32.mrb[0].mxu0
    %1874 = vmatprep.mubr.bf16.mxu0 0
    %1875 = vmatmul.mubr.bf16.gmra.mrb[0].mxu0 %v1736
    %v1876 = vpop.f32.mrb[0].mxu0
    %v1877 = vadd.f32 %v1769, %v1876
    %v1878 = vpop.f32.mrb[0].mxu0
    %v1879 = vpop.f32.mrb[0].mxu0
    %v1880 = vadd.f32 %v1769, %v1879
    %v1881 = vpop.f32.mrb[0].mxu0
    %1882 = vmatprep.mubr.bf16.mxu0 0
    %1883 = vmatmul.mubr.bf16.gmra.mrb[0].mxu0 %v1737
    %v1884 = vpop.f32.mrb[0].mxu0
    %v1885 = vadd.f32 %v1769, %v1884
    %v1886 = vpop.f32.mrb[0].mxu0
    %v1887 = vpop.f32.mrb[0].mxu0
    %v1888 = vadd.f32 %v1769, %v1887
    %v1889 = vpop.f32.mrb[0].mxu0
    %1890 = vmatprep.mubr.bf16.mxu0 0
    %1891 = vmatmul.mubr.bf16.gmra.mrb[0].mxu0 %v1738
    %v1892 = vpop.f32.mrb[0].mxu0
    %v1893 = vadd.f32 %v1769, %v1892
    %v1894 = vpop.f32.mrb[0].mxu0
    %v1895 = vpop.f32.mrb[0].mxu0
    %v1896 = vadd.f32 %v1769, %v1895
    %v1897 = vpop.f32.mrb[0].mxu0
    %1898 = vmatprep.mubr.bf16.mxu0 0
    %1899 = vmatmul.mubr.bf16.gmra.mrb[0].mxu0 %v1739
    %v1900 = vpop.f32.mrb[0].mxu0
    %v1901 = vadd.f32 %v1769, %v1900
    %v1902 = vpop.f32.mrb[0].mxu0
    %v1903 = vpop.f32.mrb[0].mxu0
    %v1904 = vadd.f32 %v1769, %v1903
    %v1905 = vpop.f32.mrb[0].mxu0
    %1906 = vmatprep.mubr.bf16.mxu0 0
    %1907 = vmatmul.mubr.bf16.gmra.mrb[0].mxu0 %v1740
    %v1908 = vpop.f32.mrb[0].mxu0
    %v1909 = vadd.f32 %v1769, %v1908
    %v1910 = vpop.f32.mrb[0].mxu0
    %v1911 = vpop.f32.mrb[0].mxu0
    %v1912 = vadd.f32 %v1769, %v1911
    %v1913 = vpop.f32.mrb[0].mxu0
    %1914 = vmatprep.mubr.bf16.mxu0 0
    %1915 = vmatmul.mubr.bf16.gmra.mrb[0].mxu0 %v1741
    %v1916 = vpop.f32.mrb[0].mxu0
    %v1917 = vadd.f32 %v1769, %v1916
    %v1918 = vpop.f32.mrb[0].mxu0
    %v1919 = vpop.f32.mrb[0].mxu0
    %v1920 = vadd.f32 %v1769, %v1919
    %v1921 = vpop.f32.mrb[0].mxu0
    %1922 = vmatprep.mubr.bf16.mxu0 0
    %1923 = vmatmul.mubr.bf16.gmra.mrb[0].mxu0 %v1742
    %v1924 = vpop.f32.mrb[0].mxu0
    %v1925 = vadd.f32 %v1769, %v1924
    %v1926 = vpop.f32.mrb[0].mxu0
    %v1927 = vpop.f32.mrb[0].mxu0
    %v1928 = vadd.f32 %v1769, %v1927
    %v1929 = vpop.f32.mrb[0].mxu0
    %1930 = vmatprep.mubr.bf16.mxu0 0
    %1931 = vmatmul.mubr.bf16.gmra.mrb[0].mxu0 %v1743
    %v1932 = vpop.f32.mrb[0].mxu0
    %v1933 = vadd.f32 %v1769, %v1932
    %v1934 = vpop.f32.mrb[0].mxu0
    %v1935 = vpop.f32.mrb[0].mxu0
    %v1936 = vadd.f32 %v1769, %v1935
    %v1937 = vpop.f32.mrb[0].mxu0
    %1938 = vmatprep.mubr.bf16.mxu0 0
    %1939 = vmatmul.mubr.bf16.gmra.mrb[0].mxu0 %v1744
    %v1940 = vpop.f32.mrb[0].mxu0
    %v1941 = vadd.f32 %v1769, %v1940
    %v1942 = vpop.f32.mrb[0].mxu0
    %v1943 = vpop.f32.mrb[0].mxu0
    %v1944 = vadd.f32 %v1769, %v1943
    %v1945 = vpop.f32.mrb[0].mxu0
    %1946 = vmatprep.mubr.bf16.mxu0 0
    %1947 = vmatmul.mubr.bf16.gmra.mrb[0].mxu0 %v1745
    %v1948 = vpop.f32.mrb[0].mxu0
    %v1949 = vadd.f32 %v1769, %v1948
    %v1950 = vpop.f32.mrb[0].mxu0
    %v1951 = vpop.f32.mrb[0].mxu0
    %v1952 = vadd.f32 %v1769, %v1951
    %v1953 = vpop.f32.mrb[0].mxu0
    %1954 = vmatprep.mubr.bf16.mxu0 0
    %1955 = vmatmul.mubr.bf16.gmra.mrb[0].mxu0 %v1746
    %v1956 = vpop.f32.mrb[0].mxu0
    %v1957 = vadd.f32 %v1769, %v1956
    %v1958 = vpop.f32.mrb[0].mxu0
    %v1959 = vpop.f32.mrb[0].mxu0
    %v1960 = vadd.f32 %v1769, %v1959
    %v1961 = vpop.f32.mrb[0].mxu0
    %1962 = vmatprep.mubr.bf16.mxu0 0
    %1963 = vmatmul.mubr.bf16.gmra.mrb[0].mxu0 %v1747
    %v1964 = vpop.f32.mrb[0].mxu0
    %v1965 = vadd.f32 %v1769, %v1964
    %v1966 = vpop.f32.mrb[0].mxu0
    %v1967 = vpop.f32.mrb[0].mxu0
    %v1968 = vadd.f32 %v1769, %v1967
    %v1969 = vpop.f32.mrb[0].mxu0
    %1970 = vmatprep.mubr.bf16.mxu0 0
    %1971 = vmatmul.mubr.bf16.gmra.mrb[0].mxu0 %v1748
    %v1972 = vpop.f32.mrb[0].mxu0
    %v1973 = vadd.f32 %v1769, %v1972
    %v1974 = vpop.f32.mrb[0].mxu0
    %v1975 = vpop.f32.mrb[0].mxu0
    %v1976 = vadd.f32 %v1769, %v1975
    %v1977 = vpop.f32.mrb[0].mxu0
    %1978 = vdwg.mxu0
    %v1979 = vld [vmem:[#allocation8] sm:$0xff]
    %v1980 = vld [vmem:[#allocation8 + $0x8] sm:$0xff]
    %v1981 = vld [vmem:[#allocation8 + $0x10] sm:$0xff]
    %v1982 = vld [vmem:[#allocation8 + $0x18] sm:$0xff]
    %v1983 = vld [vmem:[#allocation8 + $0x20] sm:$0xff]
    %v1984 = vld [vmem:[#allocation8 + $0x28] sm:$0xff]
    %v1985 = vld [vmem:[#allocation8 + $0x30] sm:$0xff]
    %v1986 = vld [vmem:[#allocation8 + $0x38] sm:$0xff]
    %v1987 = vld [vmem:[#allocation8 + $0x40] sm:$0xff]
    %v1988 = vld [vmem:[#allocation8 + $0x48] sm:$0xff]
    %v1989 = vld [vmem:[#allocation8 + $0x50] sm:$0xff]
    %v1990 = vld [vmem:[#allocation8 + $0x58] sm:$0xff]
    %v1991 = vld [vmem:[#allocation8 + $0x60] sm:$0xff]
    %v1992 = vld [vmem:[#allocation8 + $0x68] sm:$0xff]
    %v1993 = vld [vmem:[#allocation8 + $0x70] sm:$0xff]
    %v1994 = vld [vmem:[#allocation8 + $0x78] sm:$0xff]
    %v1995 = vld [vmem:[#allocation8 + $0x80] sm:$0xff]
    %v1996 = vld [vmem:[#allocation8 + $0x88] sm:$0xff]
    %v1997 = vld [vmem:[#allocation8 + $0x90] sm:$0xff]
    %v1998 = vld [vmem:[#allocation8 + $0x98] sm:$0xff]
    %v1999 = vld [vmem:[#allocation8 + $0xa0] sm:$0xff]
    %v2000 = vld [vmem:[#allocation8 + $0xa8] sm:$0xff]
    %v2001 = vld [vmem:[#allocation8 + $0xb0] sm:$0xff]
    %v2002 = vld [vmem:[#allocation8 + $0xb8] sm:$0xff]
    %v2003 = vld [vmem:[#allocation8 + $0xc0] sm:$0xff]
    %v2004 = vld [vmem:[#allocation8 + $0xc8] sm:$0xff]
    %v2005 = vld [vmem:[#allocation8 + $0xd0] sm:$0xff]
    %v2006 = vld [vmem:[#allocation8 + $0xd8] sm:$0xff]
    %v2007 = vld [vmem:[#allocation8 + $0xe0] sm:$0xff]
    %v2008 = vld [vmem:[#allocation8 + $0xe8] sm:$0xff]
    %v2009 = vld [vmem:[#allocation8 + $0xf0] sm:$0xff]
    %v2010 = vld [vmem:[#allocation8 + $0xf8] sm:$0xff]
    %v2011 = vadd.f32 %v1979, %v1853
    %v2012 = vadd.f32 %v1980, %v1856
    %v2013 = vadd.f32 %v1981, %v1861
    %v2014 = vadd.f32 %v1982, %v1864
    %v2015 = vadd.f32 %v1983, %v1869
    %v2016 = vadd.f32 %v1984, %v1872
    %v2017 = vadd.f32 %v1985, %v1877
    %v2018 = vadd.f32 %v1986, %v1880
    %v2019 = vadd.f32 %v1987, %v1885
    %v2020 = vadd.f32 %v1988, %v1888
    %v2021 = vadd.f32 %v1989, %v1893
    %v2022 = vadd.f32 %v1990, %v1896
    %v2023 = vadd.f32 %v1991, %v1901
    %v2024 = vadd.f32 %v1992, %v1904
    %v2025 = vadd.f32 %v1993, %v1909
    %v2026 = vadd.f32 %v1994, %v1912
    %v2027 = vadd.f32 %v1995, %v1917
    %v2028 = vadd.f32 %v1996, %v1920
    %v2029 = vadd.f32 %v1997, %v1925
    %v2030 = vadd.f32 %v1998, %v1928
    %v2031 = vadd.f32 %v1999, %v1933
    %v2032 = vadd.f32 %v2000, %v1936
    %v2033 = vadd.f32 %v2001, %v1941
    %v2034 = vadd.f32 %v2002, %v1944
    %v2035 = vadd.f32 %v2003, %v1949
    %v2036 = vadd.f32 %v2004, %v1952
    %v2037 = vadd.f32 %v2005, %v1957
    %v2038 = vadd.f32 %v2006, %v1960
    %v2039 = vadd.f32 %v2007, %v1965
    %v2040 = vadd.f32 %v2008, %v1968
    %v2041 = vadd.f32 %v2009, %v1973
    %v2042 = vadd.f32 %v2010, %v1976
    %2043 = vst [vmem:[#allocation8] sm:$0xff] %v2011
    %2044 = vst [vmem:[#allocation8 + $0x8] sm:$0xff] %v2012
    %2045 = vst [vmem:[#allocation8 + $0x10] sm:$0xff] %v2013
    %2046 = vst [vmem:[#allocation8 + $0x18] sm:$0xff] %v2014
    %2047 = vst [vmem:[#allocation8 + $0x20] sm:$0xff] %v2015
    %2048 = vst [vmem:[#allocation8 + $0x28] sm:$0xff] %v2016
    %2049 = vst [vmem:[#allocation8 + $0x30] sm:$0xff] %v2017
    %2050 = vst [vmem:[#allocation8 + $0x38] sm:$0xff] %v2018
    %2051 = vst [vmem:[#allocation8 + $0x40] sm:$0xff] %v2019
    %2052 = vst [vmem:[#allocation8 + $0x48] sm:$0xff] %v2020
    %2053 = vst [vmem:[#allocation8 + $0x50] sm:$0xff] %v2021
    %2054 = vst [vmem:[#allocation8 + $0x58] sm:$0xff] %v2022
    %2055 = vst [vmem:[#allocation8 + $0x60] sm:$0xff] %v2023
    %2056 = vst [vmem:[#allocation8 + $0x68] sm:$0xff] %v2024
    %2057 = vst [vmem:[#allocation8 + $0x70] sm:$0xff] %v2025
    %2058 = vst [vmem:[#allocation8 + $0x78] sm:$0xff] %v2026
    %2059 = vst [vmem:[#allocation8 + $0x80] sm:$0xff] %v2027
    %2060 = vst [vmem:[#allocation8 + $0x88] sm:$0xff] %v2028
    %2061 = vst [vmem:[#allocation8 + $0x90] sm:$0xff] %v2029
    %2062 = vst [vmem:[#allocation8 + $0x98] sm:$0xff] %v2030
    %2063 = vst [vmem:[#allocation8 + $0xa0] sm:$0xff] %v2031
    %2064 = vst [vmem:[#allocation8 + $0xa8] sm:$0xff] %v2032
    %2065 = vst [vmem:[#allocation8 + $0xb0] sm:$0xff] %v2033
    %2066 = vst [vmem:[#allocation8 + $0xb8] sm:$0xff] %v2034
    %2067 = vst [vmem:[#allocation8 + $0xc0] sm:$0xff] %v2035
    %2068 = vst [vmem:[#allocation8 + $0xc8] sm:$0xff] %v2036
    %2069 = vst [vmem:[#allocation8 + $0xd0] sm:$0xff] %v2037
    %2070 = vst [vmem:[#allocation8 + $0xd8] sm:$0xff] %v2038
    %2071 = vst [vmem:[#allocation8 + $0xe0] sm:$0xff] %v2039
    %2072 = vst [vmem:[#allocation8 + $0xe8] sm:$0xff] %v2040
    %2073 = vst [vmem:[#allocation8 + $0xf0] sm:$0xff] %v2041
    %2074 = vst [vmem:[#allocation8 + $0xf8] sm:$0xff] %v2042
    // Predicated region
    $region26: #{tpu_custom_call.1} parent=1 // pred_check
      _
    $region27: #{tpu_custom_call.1} parent=1 // pred_check_branch
      %2076 = sbr.rel (0) target = $region29
    $region28: #{tpu_custom_call.1} parent=1 // pred_region
      %s2078 = ssub.s32 4096, 4096
      %2079 = vsyncadd [#allocation4], %s2078
      %s2080 = sshll.u32 [#allocation8], 4
      %s2081 = int_to_ptr.vmem [resolvable:$true] %s2080
      %2086 = dma.vmem_to_hbm [thread:$0]  %s2081, 4096, %s3, [#allocation4], 128, 128, 8
    $region29: #{tpu_custom_call.1} parent=1 // pred_fallthru
      _
    // Predicated region
    $region30: #{tpu_custom_call.1} parent=1 // pred_check
      _
    $region31: #{tpu_custom_call.1} parent=1 // pred_check_branch
      %2088 = sbr.rel (0) target = $region33
    $region32: #{tpu_custom_call.1} parent=1 // pred_region
      %2089 = dma.done [#allocation4], 4096
    $region33: #{tpu_custom_call.1} parent=1 // pred_fallthru
      _
    %2090 = vsyncpa [#allocation3], 1
    %2091 = vsyncpa [#allocation6], 1
    %2092 = vsyncpa [#allocation4], 1

</llo_original>
